<compile_context>
chip_gen: v5e
topology: v5e:2x2
jax: 0.10.0
libtpu: 0.0.40
codegen_flags: <defaults>
</compile_context>

<pallas_src>
import jax
import jax.numpy as jnp
from jax import lax
from jax.experimental import pallas as pl
from jax.experimental.pallas import tpu as pltpu


def _lstmnet_kernel(x_ref, w_ref, st_ref, out_ref, stout_ref, gx_ref):
    # x_ref    : (T*B, FA)       time-major flattened concat(obs, act)
    # w_ref    : (4, FA+H+1, H)  per-gate slab: [0:FA]=fused input W, [FA:FA+H]=W_hh, [FA+H]=bias
    # st_ref   : (2, B, H)       initial (h0, c0)
    # out_ref  : (T, B, H)       hidden states, time-major
    # stout_ref: (2, B, H)       final (h_n, c_n)
    # gx_ref   : (4, T, B, H)    VMEM scratch: per-gate input projections for all steps
    T, B, H = out_ref.shape
    FA = x_ref.shape[-1]

    x = x_ref[...]                                           # (T*B, FA)

    # ---- Prologue (off the serial chain): input-to-gate projection for ALL timesteps,
    # one matmul per gate block.  Gate-blocked weights keep every gate at lanes 0..H-1.
    for k in range(4):
        wf_k = w_ref[k, :FA, :]                              # (FA, H)
        b_k = w_ref[k, FA + H:, :]                           # (1, H)
        gx_ref[k] = (jnp.dot(x, wf_k, preferred_element_type=jnp.float32)
                     + b_k).reshape(T, B, H)                 # time-major, layout-preserving

    # Recurrent weights, one (H, H) block per gate, loaded once.
    whh = [w_ref[k, FA:FA + H, :] for k in range(4)]

    h = st_ref[0]                                            # (B, H)
    c = st_ref[1]                                            # (B, H)

    # ---- Fully unrolled time recurrence (T small, trace-time known).
    for t in range(T):
        zi = gx_ref[0, t] + jnp.dot(h, whh[0], preferred_element_type=jnp.float32)
        zf = gx_ref[1, t] + jnp.dot(h, whh[1], preferred_element_type=jnp.float32)
        zg = gx_ref[2, t] + jnp.dot(h, whh[2], preferred_element_type=jnp.float32)
        zo = gx_ref[3, t] + jnp.dot(h, whh[3], preferred_element_type=jnp.float32)
        i_g = jax.nn.sigmoid(zi)
        f_g = jax.nn.sigmoid(zf)
        g_g = jnp.tanh(zg)
        o_g = jax.nn.sigmoid(zo)
        c = f_g * c + i_g * g_g
        h = o_g * jnp.tanh(c)
        out_ref[t, :, :] = h                                 # dense (B,H) sublane-slab store

    stout_ref[0] = h                                         # final hidden, written once
    stout_ref[1] = c                                         # final cell, written once


def lstmnet_forward(params, obs, action, hidden):
    """obs: (B, T, F), action: (B, T, A), hidden: (h0, c0) each (1, B, H).
    Returns (out (B, T, H), (h_n (1, B, H), c_n (1, B, H)))."""
    B, T, F = obs.shape
    A = action.shape[-1]
    H = params["w_hh"].shape[0]                              # w_hh: (H, 4H)
    o_dim = params["w_obs"].shape[1]                         # derive split (no hard-coded 10)
    FA = F + A

    # Fuse obs_layer / action_layer (pure linear, no activation) into the LSTM input
    # weights (cuDNN-style): x_gates = [obs|act] @ Wf + bf.
    w_ih = params["w_ih"]                                    # (o_dim + a_dim, 4H)
    wf_obs = params["w_obs"] @ w_ih[:o_dim, :]               # (F, 4H)
    wf_act = params["w_act"] @ w_ih[o_dim:, :]               # (A, 4H)
    wf = jnp.concatenate([wf_obs, wf_act], axis=0)           # (FA, 4H)
    bf = (params["b_obs"] @ w_ih[:o_dim, :]
          + params["b_act"] @ w_ih[o_dim:, :]
          + params["b_gates"])                               # (1, 4H)
    whh = params["w_hh"]                                     # (H, 4H)

    # Gate-blocked single weight/bias slab: (4, FA + H + 1, H).
    wf_g = wf.reshape(FA, 4, H).transpose(1, 0, 2)           # (4, FA, H)
    whh_g = whh.reshape(H, 4, H).transpose(1, 0, 2)          # (4, H, H)
    bf_g = bf.reshape(1, 4, H).transpose(1, 0, 2)            # (4, 1, H)
    w_slab = jnp.concatenate([wf_g, whh_g, bf_g], axis=1).astype(jnp.float32)

    # Single time-major input slab (wrapper-side concat/transpose is ~free in XLA).
    x = jnp.concatenate([obs, action], axis=-1).astype(jnp.float32)      # (B, T, FA)
    x_tm = jnp.transpose(x, (1, 0, 2)).reshape(T * B, FA)                # (T*B, FA)

    # Single state slab (h0, c0).
    st0 = jnp.stack([hidden[0][0], hidden[1][0]], axis=0).astype(jnp.float32)  # (2, B, H)

    vmem = pl.BlockSpec(memory_space=pltpu.MemorySpace.VMEM)

    out_tm, st_out = pl.pallas_call(
        _lstmnet_kernel,
        out_shape=(
            jax.ShapeDtypeStruct((T, B, H), jnp.float32),
            jax.ShapeDtypeStruct((2, B, H), jnp.float32),
        ),
        in_specs=[vmem, vmem, vmem],
        out_specs=(vmem, vmem),
        scratch_shapes=[pltpu.VMEM((4, T, B, H), jnp.float32)],
    )(x_tm, w_slab, st0)

    out = jnp.transpose(out_tm, (1, 0, 2))                   # back to batch-first (B, T, H)
    return out, (st_out[0][None], st_out[1][None])


def lstmnet_reference(params, obs, action, hidden):
    """Pure-JAX reference replicating torch semantics (non-fused, for verification)."""
    H = params["w_hh"].shape[0]
    post_obs = obs @ params["w_obs"] + params["b_obs"]       # (B, T, 10)
    post_act = action @ params["w_act"] + params["b_act"]    # (B, T, 10)
    x = jnp.concatenate([post_obs, post_act], axis=-1)       # (B, T, 20)

    def step(carry, xt):
        h, c = carry
        gates = xt @ params["w_ih"] + h @ params["w_hh"] + params["b_gates"][0]
        i = jax.nn.sigmoid(gates[:, 0 * H:1 * H])
        f = jax.nn.sigmoid(gates[:, 1 * H:2 * H])
        g = jnp.tanh(gates[:, 2 * H:3 * H])
        o = jax.nn.sigmoid(gates[:, 3 * H:4 * H])
        c = f * c + i * g
        h = o * jnp.tanh(c)
        return (h, c), h

    h0, c0 = hidden[0][0], hidden[1][0]
    (h_n, c_n), outs = lax.scan(step, (h0, c0), jnp.transpose(x, (1, 0, 2)))
    return jnp.transpose(outs, (1, 0, 2)), (h_n[None], c_n[None])


def init_params(key, feature_dim, action_dim, hid_dim):
    ks = jax.random.split(key, 7)
    s = 0.1
    return {
        "w_obs": s * jax.random.normal(ks[0], (feature_dim, 10), jnp.float32),
        "b_obs": s * jax.random.normal(ks[1], (1, 10), jnp.float32),
        "w_act": s * jax.random.normal(ks[2], (action_dim, 10), jnp.float32),
        "b_act": s * jax.random.normal(ks[3], (1, 10), jnp.float32),
        "w_ih": s * jax.random.normal(ks[4], (20, 4 * hid_dim), jnp.float32),
        "w_hh": s * jax.random.normal(ks[5], (hid_dim, 4 * hid_dim), jnp.float32),
        # combined b_ih + b_hh
        "b_gates": s * jax.random.normal(ks[6], (1, 4 * hid_dim), jnp.float32),
    }


if __name__ == "__main__":
    feature_dim, action_dim, hid_dim = 4, 4, 32
    B, T = 2, 8

    key = jax.random.PRNGKey(0)
    kp, ko, ka, kh, kc = jax.random.split(key, 5)
    params = init_params(kp, feature_dim, action_dim, hid_dim)

    obs = jax.random.normal(ko, (B, T, feature_dim), jnp.float32)
    action = jax.random.normal(ka, (B, T, action_dim), jnp.float32)
    # hidden shape matches hiddenInitialize: (num_layers=1, B, hid_dim); nonzero values
    # exercise the h0/c0 path.
    hidden = (0.1 * jax.random.normal(kh, (1, B, hid_dim), jnp.float32),
              0.1 * jax.random.normal(kc, (1, B, hid_dim), jnp.float32))

    out, (h_n, c_n) = lstmnet_forward(params, obs, action, hidden)
    out = jax.block_until_ready(out)
    h_n = jax.block_until_ready(h_n)
    c_n = jax.block_until_ready(c_n)

    ref_out, (ref_h, ref_c) = lstmnet_reference(params, obs, action, hidden)

    assert out.shape == (B, T, hid_dim)
    assert h_n.shape == (1, B, hid_dim) and c_n.shape == (1, B, hid_dim)
    assert jnp.allclose(out, ref_out, atol=2e-5, rtol=1e-4)
    assert jnp.allclose(h_n, ref_h, atol=2e-5, rtol=1e-4)
    assert jnp.allclose(c_n, ref_c, atol=2e-5, rtol=1e-4)

    print("KERNEL_OK")
</pallas_src>

<mosaic_0001>
module attributes {stable_mosaic.version = 11 : i64} {
  func.func @_lstmnet_kernel(%arg0: memref<16x8xf32, #tpu.memory_space<vmem>>, %arg1: memref<4x41x32xf32, #tpu.memory_space<vmem>>, %arg2: memref<2x2x32xf32, #tpu.memory_space<vmem>>, %arg3: memref<8x2x32xf32, #tpu.memory_space<vmem>>, %arg4: memref<2x2x32xf32, #tpu.memory_space<vmem>>, %arg5: memref<4x8x2x32xf32, #tpu.memory_space<vmem>>) attributes {dimension_semantics = [], scalar_prefetch = 0 : i64, scratch_operands = 1 : i64, tpu.core_type = #tpu.core_type<tc>} {
    %c0 = arith.constant 0 : index
    %c0_0 = arith.constant 0 : index
    %0 = vector.load %arg0[%c0, %c0_0] : memref<16x8xf32, #tpu.memory_space<vmem>>, vector<16x8xf32>
    %c0_1 = arith.constant 0 : index
    %c0_2 = arith.constant 0 : index
    %c0_3 = arith.constant 0 : index
    %1 = vector.load %arg1[%c0_1, %c0_2, %c0_3] : memref<4x41x32xf32, #tpu.memory_space<vmem>>, vector<1x8x32xf32>
    %2 = vector.shape_cast %1 : vector<1x8x32xf32> to vector<8x32xf32>
    %c0_4 = arith.constant 0 : index
    %c40 = arith.constant 40 : index
    %c0_5 = arith.constant 0 : index
    %3 = vector.load %arg1[%c0_4, %c40, %c0_5] : memref<4x41x32xf32, #tpu.memory_space<vmem>>, vector<1x1x32xf32>
    %4 = vector.shape_cast %3 : vector<1x1x32xf32> to vector<1x32xf32>
    %cst = arith.constant dense<0.000000e+00> : vector<16x32xf32>
    %5 = tpu.matmul %0, %2, %cst {dimension_numbers = #tpu.dot_dimension_numbers<[1], [0], [0], [1], [0, 0, 1, 1], [], []>} : vector<16x8xf32>, vector<8x32xf32>, vector<16x32xf32> -> vector<16x32xf32>
    %6 = vector.broadcast %4 : vector<1x32xf32> to vector<16x32xf32>
    %7 = arith.addf %5, %6 : vector<16x32xf32>
    %8 = vector.shape_cast %7 : vector<16x32xf32> to vector<8x2x32xf32>
    %c0_6 = arith.constant 0 : index
    %c0_7 = arith.constant 0 : index
    %c0_8 = arith.constant 0 : index
    %c0_9 = arith.constant 0 : index
    %9 = vector.load %arg5[%c0_6, %c0_7, %c0_8, %c0_9] : memref<4x8x2x32xf32, #tpu.memory_space<vmem>>, vector<1x8x2x32xf32>
    %10 = vector.shape_cast %9 : vector<1x8x2x32xf32> to vector<8x2x32xf32>
    %11 = vector.shape_cast %8 : vector<8x2x32xf32> to vector<1x8x2x32xf32>
    tpu.vector_store %arg5[%c0_6, %c0_7, %c0_8, %c0_9], %11 {strides = array<i32>} : memref<4x8x2x32xf32, #tpu.memory_space<vmem>>, vector<1x8x2x32xf32>,
    %c1 = arith.constant 1 : index
    %c0_10 = arith.constant 0 : index
    %c0_11 = arith.constant 0 : index
    %12 = vector.load %arg1[%c1, %c0_10, %c0_11] : memref<4x41x32xf32, #tpu.memory_space<vmem>>, vector<1x8x32xf32>
    %13 = vector.shape_cast %12 : vector<1x8x32xf32> to vector<8x32xf32>
    %c1_12 = arith.constant 1 : index
    %c40_13 = arith.constant 40 : index
    %c0_14 = arith.constant 0 : index
    %14 = vector.load %arg1[%c1_12, %c40_13, %c0_14] : memref<4x41x32xf32, #tpu.memory_space<vmem>>, vector<1x1x32xf32>
    %15 = vector.shape_cast %14 : vector<1x1x32xf32> to vector<1x32xf32>
    %cst_15 = arith.constant dense<0.000000e+00> : vector<16x32xf32>
    %16 = tpu.matmul %0, %13, %cst_15 {dimension_numbers = #tpu.dot_dimension_numbers<[1], [0], [0], [1], [0, 0, 1, 1], [], []>} : vector<16x8xf32>, vector<8x32xf32>, vector<16x32xf32> -> vector<16x32xf32>
    %17 = vector.broadcast %15 : vector<1x32xf32> to vector<16x32xf32>
    %18 = arith.addf %16, %17 : vector<16x32xf32>
    %19 = vector.shape_cast %18 : vector<16x32xf32> to vector<8x2x32xf32>
    %c1_16 = arith.constant 1 : index
    %c0_17 = arith.constant 0 : index
    %c0_18 = arith.constant 0 : index
    %c0_19 = arith.constant 0 : index
    %20 = vector.load %arg5[%c1_16, %c0_17, %c0_18, %c0_19] : memref<4x8x2x32xf32, #tpu.memory_space<vmem>>, vector<1x8x2x32xf32>
    %21 = vector.shape_cast %20 : vector<1x8x2x32xf32> to vector<8x2x32xf32>
    %22 = vector.shape_cast %19 : vector<8x2x32xf32> to vector<1x8x2x32xf32>
    tpu.vector_store %arg5[%c1_16, %c0_17, %c0_18, %c0_19], %22 {strides = array<i32>} : memref<4x8x2x32xf32, #tpu.memory_space<vmem>>, vector<1x8x2x32xf32>,
    %c2 = arith.constant 2 : index
    %c0_20 = arith.constant 0 : index
    %c0_21 = arith.constant 0 : index
    %23 = vector.load %arg1[%c2, %c0_20, %c0_21] : memref<4x41x32xf32, #tpu.memory_space<vmem>>, vector<1x8x32xf32>
    %24 = vector.shape_cast %23 : vector<1x8x32xf32> to vector<8x32xf32>
    %c2_22 = arith.constant 2 : index
    %c40_23 = arith.constant 40 : index
    %c0_24 = arith.constant 0 : index
    %25 = vector.load %arg1[%c2_22, %c40_23, %c0_24] : memref<4x41x32xf32, #tpu.memory_space<vmem>>, vector<1x1x32xf32>
    %26 = vector.shape_cast %25 : vector<1x1x32xf32> to vector<1x32xf32>
    %cst_25 = arith.constant dense<0.000000e+00> : vector<16x32xf32>
    %27 = tpu.matmul %0, %24, %cst_25 {dimension_numbers = #tpu.dot_dimension_numbers<[1], [0], [0], [1], [0, 0, 1, 1], [], []>} : vector<16x8xf32>, vector<8x32xf32>, vector<16x32xf32> -> vector<16x32xf32>
    %28 = vector.broadcast %26 : vector<1x32xf32> to vector<16x32xf32>
    %29 = arith.addf %27, %28 : vector<16x32xf32>
    %30 = vector.shape_cast %29 : vector<16x32xf32> to vector<8x2x32xf32>
    %c2_26 = arith.constant 2 : index
    %c0_27 = arith.constant 0 : index
    %c0_28 = arith.constant 0 : index
    %c0_29 = arith.constant 0 : index
    %31 = vector.load %arg5[%c2_26, %c0_27, %c0_28, %c0_29] : memref<4x8x2x32xf32, #tpu.memory_space<vmem>>, vector<1x8x2x32xf32>
    %32 = vector.shape_cast %31 : vector<1x8x2x32xf32> to vector<8x2x32xf32>
    %33 = vector.shape_cast %30 : vector<8x2x32xf32> to vector<1x8x2x32xf32>
    tpu.vector_store %arg5[%c2_26, %c0_27, %c0_28, %c0_29], %33 {strides = array<i32>} : memref<4x8x2x32xf32, #tpu.memory_space<vmem>>, vector<1x8x2x32xf32>,
    %c3 = arith.constant 3 : index
    %c0_30 = arith.constant 0 : index
    %c0_31 = arith.constant 0 : index
    %34 = vector.load %arg1[%c3, %c0_30, %c0_31] : memref<4x41x32xf32, #tpu.memory_space<vmem>>, vector<1x8x32xf32>
    %35 = vector.shape_cast %34 : vector<1x8x32xf32> to vector<8x32xf32>
    %c3_32 = arith.constant 3 : index
    %c40_33 = arith.constant 40 : index
    %c0_34 = arith.constant 0 : index
    %36 = vector.load %arg1[%c3_32, %c40_33, %c0_34] : memref<4x41x32xf32, #tpu.memory_space<vmem>>, vector<1x1x32xf32>
    %37 = vector.shape_cast %36 : vector<1x1x32xf32> to vector<1x32xf32>
    %cst_35 = arith.constant dense<0.000000e+00> : vector<16x32xf32>
    %38 = tpu.matmul %0, %35, %cst_35 {dimension_numbers = #tpu.dot_dimension_numbers<[1], [0], [0], [1], [0, 0, 1, 1], [], []>} : vector<16x8xf32>, vector<8x32xf32>, vector<16x32xf32> -> vector<16x32xf32>
    %39 = vector.broadcast %37 : vector<1x32xf32> to vector<16x32xf32>
    %40 = arith.addf %38, %39 : vector<16x32xf32>
    %41 = vector.shape_cast %40 : vector<16x32xf32> to vector<8x2x32xf32>
    %c3_36 = arith.constant 3 : index
    %c0_37 = arith.constant 0 : index
    %c0_38 = arith.constant 0 : index
    %c0_39 = arith.constant 0 : index
    %42 = vector.load %arg5[%c3_36, %c0_37, %c0_38, %c0_39] : memref<4x8x2x32xf32, #tpu.memory_space<vmem>>, vector<1x8x2x32xf32>
    %43 = vector.shape_cast %42 : vector<1x8x2x32xf32> to vector<8x2x32xf32>
    %44 = vector.shape_cast %41 : vector<8x2x32xf32> to vector<1x8x2x32xf32>
    tpu.vector_store %arg5[%c3_36, %c0_37, %c0_38, %c0_39], %44 {strides = array<i32>} : memref<4x8x2x32xf32, #tpu.memory_space<vmem>>, vector<1x8x2x32xf32>,
    %c0_40 = arith.constant 0 : index
    %c8 = arith.constant 8 : index
    %c0_41 = arith.constant 0 : index
    %45 = vector.load %arg1[%c0_40, %c8, %c0_41] : memref<4x41x32xf32, #tpu.memory_space<vmem>>, vector<1x32x32xf32>
    %46 = vector.shape_cast %45 : vector<1x32x32xf32> to vector<32x32xf32>
    %c1_42 = arith.constant 1 : index
    %c8_43 = arith.constant 8 : index
    %c0_44 = arith.constant 0 : index
    %47 = vector.load %arg1[%c1_42, %c8_43, %c0_44] : memref<4x41x32xf32, #tpu.memory_space<vmem>>, vector<1x32x32xf32>
    %48 = vector.shape_cast %47 : vector<1x32x32xf32> to vector<32x32xf32>
    %c2_45 = arith.constant 2 : index
    %c8_46 = arith.constant 8 : index
    %c0_47 = arith.constant 0 : index
    %49 = vector.load %arg1[%c2_45, %c8_46, %c0_47] : memref<4x41x32xf32, #tpu.memory_space<vmem>>, vector<1x32x32xf32>
    %50 = vector.shape_cast %49 : vector<1x32x32xf32> to vector<32x32xf32>
    %c3_48 = arith.constant 3 : index
    %c8_49 = arith.constant 8 : index
    %c0_50 = arith.constant 0 : index
    %51 = vector.load %arg1[%c3_48, %c8_49, %c0_50] : memref<4x41x32xf32, #tpu.memory_space<vmem>>, vector<1x32x32xf32>
    %52 = vector.shape_cast %51 : vector<1x32x32xf32> to vector<32x32xf32>
    %c0_51 = arith.constant 0 : index
    %c0_52 = arith.constant 0 : index
    %c0_53 = arith.constant 0 : index
    %53 = vector.load %arg2[%c0_51, %c0_52, %c0_53] : memref<2x2x32xf32, #tpu.memory_space<vmem>>, vector<1x2x32xf32>
    %54 = vector.shape_cast %53 : vector<1x2x32xf32> to vector<2x32xf32>
    %c1_54 = arith.constant 1 : index
    %c0_55 = arith.constant 0 : index
    %c0_56 = arith.constant 0 : index
    %55 = vector.load %arg2[%c1_54, %c0_55, %c0_56] : memref<2x2x32xf32, #tpu.memory_space<vmem>>, vector<1x2x32xf32>
    %56 = vector.shape_cast %55 : vector<1x2x32xf32> to vector<2x32xf32>
    %c0_57 = arith.constant 0 : index
    %c0_58 = arith.constant 0 : index
    %c0_59 = arith.constant 0 : index
    %c0_60 = arith.constant 0 : index
    %57 = vector.load %arg5[%c0_57, %c0_58, %c0_59, %c0_60] : memref<4x8x2x32xf32, #tpu.memory_space<vmem>>, vector<1x1x2x32xf32>
    %58 = vector.shape_cast %57 : vector<1x1x2x32xf32> to vector<2x32xf32>
    %cst_61 = arith.constant dense<0.000000e+00> : vector<2x32xf32>
    %59 = tpu.matmul %54, %46, %cst_61 {dimension_numbers = #tpu.dot_dimension_numbers<[1], [0], [0], [1], [0, 0, 1, 1], [], []>} : vector<2x32xf32>, vector<32x32xf32>, vector<2x32xf32> -> vector<2x32xf32>
    %60 = arith.addf %58, %59 : vector<2x32xf32>
    %c1_62 = arith.constant 1 : index
    %c0_63 = arith.constant 0 : index
    %c0_64 = arith.constant 0 : index
    %c0_65 = arith.constant 0 : index
    %61 = vector.load %arg5[%c1_62, %c0_63, %c0_64, %c0_65] : memref<4x8x2x32xf32, #tpu.memory_space<vmem>>, vector<1x1x2x32xf32>
    %62 = vector.shape_cast %61 : vector<1x1x2x32xf32> to vector<2x32xf32>
    %cst_66 = arith.constant dense<0.000000e+00> : vector<2x32xf32>
    %63 = tpu.matmul %54, %48, %cst_66 {dimension_numbers = #tpu.dot_dimension_numbers<[1], [0], [0], [1], [0, 0, 1, 1], [], []>} : vector<2x32xf32>, vector<32x32xf32>, vector<2x32xf32> -> vector<2x32xf32>
    %64 = arith.addf %62, %63 : vector<2x32xf32>
    %c2_67 = arith.constant 2 : index
    %c0_68 = arith.constant 0 : index
    %c0_69 = arith.constant 0 : index
    %c0_70 = arith.constant 0 : index
    %65 = vector.load %arg5[%c2_67, %c0_68, %c0_69, %c0_70] : memref<4x8x2x32xf32, #tpu.memory_space<vmem>>, vector<1x1x2x32xf32>
    %66 = vector.shape_cast %65 : vector<1x1x2x32xf32> to vector<2x32xf32>
    %cst_71 = arith.constant dense<0.000000e+00> : vector<2x32xf32>
    %67 = tpu.matmul %54, %50, %cst_71 {dimension_numbers = #tpu.dot_dimension_numbers<[1], [0], [0], [1], [0, 0, 1, 1], [], []>} : vector<2x32xf32>, vector<32x32xf32>, vector<2x32xf32> -> vector<2x32xf32>
    %68 = arith.addf %66, %67 : vector<2x32xf32>
    %c3_72 = arith.constant 3 : index
    %c0_73 = arith.constant 0 : index
    %c0_74 = arith.constant 0 : index
    %c0_75 = arith.constant 0 : index
    %69 = vector.load %arg5[%c3_72, %c0_73, %c0_74, %c0_75] : memref<4x8x2x32xf32, #tpu.memory_space<vmem>>, vector<1x1x2x32xf32>
    %70 = vector.shape_cast %69 : vector<1x1x2x32xf32> to vector<2x32xf32>
    %cst_76 = arith.constant dense<0.000000e+00> : vector<2x32xf32>
    %71 = tpu.matmul %54, %52, %cst_76 {dimension_numbers = #tpu.dot_dimension_numbers<[1], [0], [0], [1], [0, 0, 1, 1], [], []>} : vector<2x32xf32>, vector<32x32xf32>, vector<2x32xf32> -> vector<2x32xf32>
    %72 = arith.addf %70, %71 : vector<2x32xf32>
    %73 = arith.negf %60 : vector<2x32xf32>
    %74 = math.exp %73 : vector<2x32xf32>
    %cst_77 = arith.constant 1.000000e+00 : f32
    %75 = vector.broadcast %cst_77 : f32 to vector<2x32xf32>
    %76 = arith.addf %75, %74 : vector<2x32xf32>
    %77 = arith.divf %75, %76 : vector<2x32xf32>
    %78 = arith.negf %64 : vector<2x32xf32>
    %79 = math.exp %78 : vector<2x32xf32>
    %cst_78 = arith.constant 1.000000e+00 : f32
    %80 = vector.broadcast %cst_78 : f32 to vector<2x32xf32>
    %81 = arith.addf %80, %79 : vector<2x32xf32>
    %82 = arith.divf %80, %81 : vector<2x32xf32>
    %83 = math.tanh %68 : vector<2x32xf32>
    %84 = arith.negf %72 : vector<2x32xf32>
    %85 = math.exp %84 : vector<2x32xf32>
    %cst_79 = arith.constant 1.000000e+00 : f32
    %86 = vector.broadcast %cst_79 : f32 to vector<2x32xf32>
    %87 = arith.addf %86, %85 : vector<2x32xf32>
    %88 = arith.divf %86, %87 : vector<2x32xf32>
    %89 = arith.mulf %82, %56 : vector<2x32xf32>
    %90 = arith.mulf %77, %83 : vector<2x32xf32>
    %91 = arith.addf %89, %90 : vector<2x32xf32>
    %92 = math.tanh %91 : vector<2x32xf32>
    %93 = arith.mulf %88, %92 : vector<2x32xf32>
    %c0_80 = arith.constant 0 : index
    %c0_81 = arith.constant 0 : index
    %c0_82 = arith.constant 0 : index
    %94 = vector.load %arg3[%c0_80, %c0_81, %c0_82] : memref<8x2x32xf32, #tpu.memory_space<vmem>>, vector<1x2x32xf32>
    %95 = vector.shape_cast %94 : vector<1x2x32xf32> to vector<2x32xf32>
    %96 = vector.shape_cast %93 : vector<2x32xf32> to vector<1x2x32xf32>
    tpu.vector_store %arg3[%c0_80, %c0_81, %c0_82], %96 {strides = array<i32>} : memref<8x2x32xf32, #tpu.memory_space<vmem>>, vector<1x2x32xf32>,
    %c0_83 = arith.constant 0 : index
    %c1_84 = arith.constant 1 : index
    %c0_85 = arith.constant 0 : index
    %c0_86 = arith.constant 0 : index
    %97 = vector.load %arg5[%c0_83, %c1_84, %c0_85, %c0_86] : memref<4x8x2x32xf32, #tpu.memory_space<vmem>>, vector<1x1x2x32xf32>
    %98 = vector.shape_cast %97 : vector<1x1x2x32xf32> to vector<2x32xf32>
    %cst_87 = arith.constant dense<0.000000e+00> : vector<2x32xf32>
    %99 = tpu.matmul %93, %46, %cst_87 {dimension_numbers = #tpu.dot_dimension_numbers<[1], [0], [0], [1], [0, 0, 1, 1], [], []>} : vector<2x32xf32>, vector<32x32xf32>, vector<2x32xf32> -> vector<2x32xf32>
    %100 = arith.addf %98, %99 : vector<2x32xf32>
    %c1_88 = arith.constant 1 : index
    %c1_89 = arith.constant 1 : index
    %c0_90 = arith.constant 0 : index
    %c0_91 = arith.constant 0 : index
    %101 = vector.load %arg5[%c1_88, %c1_89, %c0_90, %c0_91] : memref<4x8x2x32xf32, #tpu.memory_space<vmem>>, vector<1x1x2x32xf32>
    %102 = vector.shape_cast %101 : vector<1x1x2x32xf32> to vector<2x32xf32>
    %cst_92 = arith.constant dense<0.000000e+00> : vector<2x32xf32>
    %103 = tpu.matmul %93, %48, %cst_92 {dimension_numbers = #tpu.dot_dimension_numbers<[1], [0], [0], [1], [0, 0, 1, 1], [], []>} : vector<2x32xf32>, vector<32x32xf32>, vector<2x32xf32> -> vector<2x32xf32>
    %104 = arith.addf %102, %103 : vector<2x32xf32>
    %c2_93 = arith.constant 2 : index
    %c1_94 = arith.constant 1 : index
    %c0_95 = arith.constant 0 : index
    %c0_96 = arith.constant 0 : index
    %105 = vector.load %arg5[%c2_93, %c1_94, %c0_95, %c0_96] : memref<4x8x2x32xf32, #tpu.memory_space<vmem>>, vector<1x1x2x32xf32>
    %106 = vector.shape_cast %105 : vector<1x1x2x32xf32> to vector<2x32xf32>
    %cst_97 = arith.constant dense<0.000000e+00> : vector<2x32xf32>
    %107 = tpu.matmul %93, %50, %cst_97 {dimension_numbers = #tpu.dot_dimension_numbers<[1], [0], [0], [1], [0, 0, 1, 1], [], []>} : vector<2x32xf32>, vector<32x32xf32>, vector<2x32xf32> -> vector<2x32xf32>
    %108 = arith.addf %106, %107 : vector<2x32xf32>
    %c3_98 = arith.constant 3 : index
    %c1_99 = arith.constant 1 : index
    %c0_100 = arith.constant 0 : index
    %c0_101 = arith.constant 0 : index
    %109 = vector.load %arg5[%c3_98, %c1_99, %c0_100, %c0_101] : memref<4x8x2x32xf32, #tpu.memory_space<vmem>>, vector<1x1x2x32xf32>
    %110 = vector.shape_cast %109 : vector<1x1x2x32xf32> to vector<2x32xf32>
    %cst_102 = arith.constant dense<0.000000e+00> : vector<2x32xf32>
    %111 = tpu.matmul %93, %52, %cst_102 {dimension_numbers = #tpu.dot_dimension_numbers<[1], [0], [0], [1], [0, 0, 1, 1], [], []>} : vector<2x32xf32>, vector<32x32xf32>, vector<2x32xf32> -> vector<2x32xf32>
    %112 = arith.addf %110, %111 : vector<2x32xf32>
    %113 = arith.negf %100 : vector<2x32xf32>
    %114 = math.exp %113 : vector<2x32xf32>
    %cst_103 = arith.constant 1.000000e+00 : f32
    %115 = vector.broadcast %cst_103 : f32 to vector<2x32xf32>
    %116 = arith.addf %115, %114 : vector<2x32xf32>
    %117 = arith.divf %115, %116 : vector<2x32xf32>
    %118 = arith.negf %104 : vector<2x32xf32>
    %119 = math.exp %118 : vector<2x32xf32>
    %cst_104 = arith.constant 1.000000e+00 : f32
    %120 = vector.broadcast %cst_104 : f32 to vector<2x32xf32>
    %121 = arith.addf %120, %119 : vector<2x32xf32>
    %122 = arith.divf %120, %121 : vector<2x32xf32>
    %123 = math.tanh %108 : vector<2x32xf32>
    %124 = arith.negf %112 : vector<2x32xf32>
    %125 = math.exp %124 : vector<2x32xf32>
    %cst_105 = arith.constant 1.000000e+00 : f32
    %126 = vector.broadcast %cst_105 : f32 to vector<2x32xf32>
    %127 = arith.addf %126, %125 : vector<2x32xf32>
    %128 = arith.divf %126, %127 : vector<2x32xf32>
    %129 = arith.mulf %122, %91 : vector<2x32xf32>
    %130 = arith.mulf %117, %123 : vector<2x32xf32>
    %131 = arith.addf %129, %130 : vector<2x32xf32>
    %132 = math.tanh %131 : vector<2x32xf32>
    %133 = arith.mulf %128, %132 : vector<2x32xf32>
    %c1_106 = arith.constant 1 : index
    %c0_107 = arith.constant 0 : index
    %c0_108 = arith.constant 0 : index
    %134 = vector.load %arg3[%c1_106, %c0_107, %c0_108] : memref<8x2x32xf32, #tpu.memory_space<vmem>>, vector<1x2x32xf32>
    %135 = vector.shape_cast %134 : vector<1x2x32xf32> to vector<2x32xf32>
    %136 = vector.shape_cast %133 : vector<2x32xf32> to vector<1x2x32xf32>
    tpu.vector_store %arg3[%c1_106, %c0_107, %c0_108], %136 {strides = array<i32>} : memref<8x2x32xf32, #tpu.memory_space<vmem>>, vector<1x2x32xf32>,
    %c0_109 = arith.constant 0 : index
    %c2_110 = arith.constant 2 : index
    %c0_111 = arith.constant 0 : index
    %c0_112 = arith.constant 0 : index
    %137 = vector.load %arg5[%c0_109, %c2_110, %c0_111, %c0_112] : memref<4x8x2x32xf32, #tpu.memory_space<vmem>>, vector<1x1x2x32xf32>
    %138 = vector.shape_cast %137 : vector<1x1x2x32xf32> to vector<2x32xf32>
    %cst_113 = arith.constant dense<0.000000e+00> : vector<2x32xf32>
    %139 = tpu.matmul %133, %46, %cst_113 {dimension_numbers = #tpu.dot_dimension_numbers<[1], [0], [0], [1], [0, 0, 1, 1], [], []>} : vector<2x32xf32>, vector<32x32xf32>, vector<2x32xf32> -> vector<2x32xf32>
    %140 = arith.addf %138, %139 : vector<2x32xf32>
    %c1_114 = arith.constant 1 : index
    %c2_115 = arith.constant 2 : index
    %c0_116 = arith.constant 0 : index
    %c0_117 = arith.constant 0 : index
    %141 = vector.load %arg5[%c1_114, %c2_115, %c0_116, %c0_117] : memref<4x8x2x32xf32, #tpu.memory_space<vmem>>, vector<1x1x2x32xf32>
    %142 = vector.shape_cast %141 : vector<1x1x2x32xf32> to vector<2x32xf32>
    %cst_118 = arith.constant dense<0.000000e+00> : vector<2x32xf32>
    %143 = tpu.matmul %133, %48, %cst_118 {dimension_numbers = #tpu.dot_dimension_numbers<[1], [0], [0], [1], [0, 0, 1, 1], [], []>} : vector<2x32xf32>, vector<32x32xf32>, vector<2x32xf32> -> vector<2x32xf32>
    %144 = arith.addf %142, %143 : vector<2x32xf32>
    %c2_119 = arith.constant 2 : index
    %c2_120 = arith.constant 2 : index
    %c0_121 = arith.constant 0 : index
    %c0_122 = arith.constant 0 : index
    %145 = vector.load %arg5[%c2_119, %c2_120, %c0_121, %c0_122] : memref<4x8x2x32xf32, #tpu.memory_space<vmem>>, vector<1x1x2x32xf32>
    %146 = vector.shape_cast %145 : vector<1x1x2x32xf32> to vector<2x32xf32>
    %cst_123 = arith.constant dense<0.000000e+00> : vector<2x32xf32>
    %147 = tpu.matmul %133, %50, %cst_123 {dimension_numbers = #tpu.dot_dimension_numbers<[1], [0], [0], [1], [0, 0, 1, 1], [], []>} : vector<2x32xf32>, vector<32x32xf32>, vector<2x32xf32> -> vector<2x32xf32>
    %148 = arith.addf %146, %147 : vector<2x32xf32>
    %c3_124 = arith.constant 3 : index
    %c2_125 = arith.constant 2 : index
    %c0_126 = arith.constant 0 : index
    %c0_127 = arith.constant 0 : index
    %149 = vector.load %arg5[%c3_124, %c2_125, %c0_126, %c0_127] : memref<4x8x2x32xf32, #tpu.memory_space<vmem>>, vector<1x1x2x32xf32>
    %150 = vector.shape_cast %149 : vector<1x1x2x32xf32> to vector<2x32xf32>
    %cst_128 = arith.constant dense<0.000000e+00> : vector<2x32xf32>
    %151 = tpu.matmul %133, %52, %cst_128 {dimension_numbers = #tpu.dot_dimension_numbers<[1], [0], [0], [1], [0, 0, 1, 1], [], []>} : vector<2x32xf32>, vector<32x32xf32>, vector<2x32xf32> -> vector<2x32xf32>
    %152 = arith.addf %150, %151 : vector<2x32xf32>
    %153 = arith.negf %140 : vector<2x32xf32>
    %154 = math.exp %153 : vector<2x32xf32>
    %cst_129 = arith.constant 1.000000e+00 : f32
    %155 = vector.broadcast %cst_129 : f32 to vector<2x32xf32>
    %156 = arith.addf %155, %154 : vector<2x32xf32>
    %157 = arith.divf %155, %156 : vector<2x32xf32>
    %158 = arith.negf %144 : vector<2x32xf32>
    %159 = math.exp %158 : vector<2x32xf32>
    %cst_130 = arith.constant 1.000000e+00 : f32
    %160 = vector.broadcast %cst_130 : f32 to vector<2x32xf32>
    %161 = arith.addf %160, %159 : vector<2x32xf32>
    %162 = arith.divf %160, %161 : vector<2x32xf32>
    %163 = math.tanh %148 : vector<2x32xf32>
    %164 = arith.negf %152 : vector<2x32xf32>
    %165 = math.exp %164 : vector<2x32xf32>
    %cst_131 = arith.constant 1.000000e+00 : f32
    %166 = vector.broadcast %cst_131 : f32 to vector<2x32xf32>
    %167 = arith.addf %166, %165 : vector<2x32xf32>
    %168 = arith.divf %166, %167 : vector<2x32xf32>
    %169 = arith.mulf %162, %131 : vector<2x32xf32>
    %170 = arith.mulf %157, %163 : vector<2x32xf32>
    %171 = arith.addf %169, %170 : vector<2x32xf32>
    %172 = math.tanh %171 : vector<2x32xf32>
    %173 = arith.mulf %168, %172 : vector<2x32xf32>
    %c2_132 = arith.constant 2 : index
    %c0_133 = arith.constant 0 : index
    %c0_134 = arith.constant 0 : index
    %174 = vector.load %arg3[%c2_132, %c0_133, %c0_134] : memref<8x2x32xf32, #tpu.memory_space<vmem>>, vector<1x2x32xf32>
    %175 = vector.shape_cast %174 : vector<1x2x32xf32> to vector<2x32xf32>
    %176 = vector.shape_cast %173 : vector<2x32xf32> to vector<1x2x32xf32>
    tpu.vector_store %arg3[%c2_132, %c0_133, %c0_134], %176 {strides = array<i32>} : memref<8x2x32xf32, #tpu.memory_space<vmem>>, vector<1x2x32xf32>,
    %c0_135 = arith.constant 0 : index
    %c3_136 = arith.constant 3 : index
    %c0_137 = arith.constant 0 : index
    %c0_138 = arith.constant 0 : index
    %177 = vector.load %arg5[%c0_135, %c3_136, %c0_137, %c0_138] : memref<4x8x2x32xf32, #tpu.memory_space<vmem>>, vector<1x1x2x32xf32>
    %178 = vector.shape_cast %177 : vector<1x1x2x32xf32> to vector<2x32xf32>
    %cst_139 = arith.constant dense<0.000000e+00> : vector<2x32xf32>
    %179 = tpu.matmul %173, %46, %cst_139 {dimension_numbers = #tpu.dot_dimension_numbers<[1], [0], [0], [1], [0, 0, 1, 1], [], []>} : vector<2x32xf32>, vector<32x32xf32>, vector<2x32xf32> -> vector<2x32xf32>
    %180 = arith.addf %178, %179 : vector<2x32xf32>
    %c1_140 = arith.constant 1 : index
    %c3_141 = arith.constant 3 : index
    %c0_142 = arith.constant 0 : index
    %c0_143 = arith.constant 0 : index
    %181 = vector.load %arg5[%c1_140, %c3_141, %c0_142, %c0_143] : memref<4x8x2x32xf32, #tpu.memory_space<vmem>>, vector<1x1x2x32xf32>
    %182 = vector.shape_cast %181 : vector<1x1x2x32xf32> to vector<2x32xf32>
    %cst_144 = arith.constant dense<0.000000e+00> : vector<2x32xf32>
    %183 = tpu.matmul %173, %48, %cst_144 {dimension_numbers = #tpu.dot_dimension_numbers<[1], [0], [0], [1], [0, 0, 1, 1], [], []>} : vector<2x32xf32>, vector<32x32xf32>, vector<2x32xf32> -> vector<2x32xf32>
    %184 = arith.addf %182, %183 : vector<2x32xf32>
    %c2_145 = arith.constant 2 : index
    %c3_146 = arith.constant 3 : index
    %c0_147 = arith.constant 0 : index
    %c0_148 = arith.constant 0 : index
    %185 = vector.load %arg5[%c2_145, %c3_146, %c0_147, %c0_148] : memref<4x8x2x32xf32, #tpu.memory_space<vmem>>, vector<1x1x2x32xf32>
    %186 = vector.shape_cast %185 : vector<1x1x2x32xf32> to vector<2x32xf32>
    %cst_149 = arith.constant dense<0.000000e+00> : vector<2x32xf32>
    %187 = tpu.matmul %173, %50, %cst_149 {dimension_numbers = #tpu.dot_dimension_numbers<[1], [0], [0], [1], [0, 0, 1, 1], [], []>} : vector<2x32xf32>, vector<32x32xf32>, vector<2x32xf32> -> vector<2x32xf32>
    %188 = arith.addf %186, %187 : vector<2x32xf32>
    %c3_150 = arith.constant 3 : index
    %c3_151 = arith.constant 3 : index
    %c0_152 = arith.constant 0 : index
    %c0_153 = arith.constant 0 : index
    %189 = vector.load %arg5[%c3_150, %c3_151, %c0_152, %c0_153] : memref<4x8x2x32xf32, #tpu.memory_space<vmem>>, vector<1x1x2x32xf32>
    %190 = vector.shape_cast %189 : vector<1x1x2x32xf32> to vector<2x32xf32>
    %cst_154 = arith.constant dense<0.000000e+00> : vector<2x32xf32>
    %191 = tpu.matmul %173, %52, %cst_154 {dimension_numbers = #tpu.dot_dimension_numbers<[1], [0], [0], [1], [0, 0, 1, 1], [], []>} : vector<2x32xf32>, vector<32x32xf32>, vector<2x32xf32> -> vector<2x32xf32>
    %192 = arith.addf %190, %191 : vector<2x32xf32>
    %193 = arith.negf %180 : vector<2x32xf32>
    %194 = math.exp %193 : vector<2x32xf32>
    %cst_155 = arith.constant 1.000000e+00 : f32
    %195 = vector.broadcast %cst_155 : f32 to vector<2x32xf32>
    %196 = arith.addf %195, %194 : vector<2x32xf32>
    %197 = arith.divf %195, %196 : vector<2x32xf32>
    %198 = arith.negf %184 : vector<2x32xf32>
    %199 = math.exp %198 : vector<2x32xf32>
    %cst_156 = arith.constant 1.000000e+00 : f32
    %200 = vector.broadcast %cst_156 : f32 to vector<2x32xf32>
    %201 = arith.addf %200, %199 : vector<2x32xf32>
    %202 = arith.divf %200, %201 : vector<2x32xf32>
    %203 = math.tanh %188 : vector<2x32xf32>
    %204 = arith.negf %192 : vector<2x32xf32>
    %205 = math.exp %204 : vector<2x32xf32>
    %cst_157 = arith.constant 1.000000e+00 : f32
    %206 = vector.broadcast %cst_157 : f32 to vector<2x32xf32>
    %207 = arith.addf %206, %205 : vector<2x32xf32>
    %208 = arith.divf %206, %207 : vector<2x32xf32>
    %209 = arith.mulf %202, %171 : vector<2x32xf32>
    %210 = arith.mulf %197, %203 : vector<2x32xf32>
    %211 = arith.addf %209, %210 : vector<2x32xf32>
    %212 = math.tanh %211 : vector<2x32xf32>
    %213 = arith.mulf %208, %212 : vector<2x32xf32>
    %c3_158 = arith.constant 3 : index
    %c0_159 = arith.constant 0 : index
    %c0_160 = arith.constant 0 : index
    %214 = vector.load %arg3[%c3_158, %c0_159, %c0_160] : memref<8x2x32xf32, #tpu.memory_space<vmem>>, vector<1x2x32xf32>
    %215 = vector.shape_cast %214 : vector<1x2x32xf32> to vector<2x32xf32>
    %216 = vector.shape_cast %213 : vector<2x32xf32> to vector<1x2x32xf32>
    tpu.vector_store %arg3[%c3_158, %c0_159, %c0_160], %216 {strides = array<i32>} : memref<8x2x32xf32, #tpu.memory_space<vmem>>, vector<1x2x32xf32>,
    %c0_161 = arith.constant 0 : index
    %c4 = arith.constant 4 : index
    %c0_162 = arith.constant 0 : index
    %c0_163 = arith.constant 0 : index
    %217 = vector.load %arg5[%c0_161, %c4, %c0_162, %c0_163] : memref<4x8x2x32xf32, #tpu.memory_space<vmem>>, vector<1x1x2x32xf32>
    %218 = vector.shape_cast %217 : vector<1x1x2x32xf32> to vector<2x32xf32>
    %cst_164 = arith.constant dense<0.000000e+00> : vector<2x32xf32>
    %219 = tpu.matmul %213, %46, %cst_164 {dimension_numbers = #tpu.dot_dimension_numbers<[1], [0], [0], [1], [0, 0, 1, 1], [], []>} : vector<2x32xf32>, vector<32x32xf32>, vector<2x32xf32> -> vector<2x32xf32>
    %220 = arith.addf %218, %219 : vector<2x32xf32>
    %c1_165 = arith.constant 1 : index
    %c4_166 = arith.constant 4 : index
    %c0_167 = arith.constant 0 : index
    %c0_168 = arith.constant 0 : index
    %221 = vector.load %arg5[%c1_165, %c4_166, %c0_167, %c0_168] : memref<4x8x2x32xf32, #tpu.memory_space<vmem>>, vector<1x1x2x32xf32>
    %222 = vector.shape_cast %221 : vector<1x1x2x32xf32> to vector<2x32xf32>
    %cst_169 = arith.constant dense<0.000000e+00> : vector<2x32xf32>
    %223 = tpu.matmul %213, %48, %cst_169 {dimension_numbers = #tpu.dot_dimension_numbers<[1], [0], [0], [1], [0, 0, 1, 1], [], []>} : vector<2x32xf32>, vector<32x32xf32>, vector<2x32xf32> -> vector<2x32xf32>
    %224 = arith.addf %222, %223 : vector<2x32xf32>
    %c2_170 = arith.constant 2 : index
    %c4_171 = arith.constant 4 : index
    %c0_172 = arith.constant 0 : index
    %c0_173 = arith.constant 0 : index
    %225 = vector.load %arg5[%c2_170, %c4_171, %c0_172, %c0_173] : memref<4x8x2x32xf32, #tpu.memory_space<vmem>>, vector<1x1x2x32xf32>
    %226 = vector.shape_cast %225 : vector<1x1x2x32xf32> to vector<2x32xf32>
    %cst_174 = arith.constant dense<0.000000e+00> : vector<2x32xf32>
    %227 = tpu.matmul %213, %50, %cst_174 {dimension_numbers = #tpu.dot_dimension_numbers<[1], [0], [0], [1], [0, 0, 1, 1], [], []>} : vector<2x32xf32>, vector<32x32xf32>, vector<2x32xf32> -> vector<2x32xf32>
    %228 = arith.addf %226, %227 : vector<2x32xf32>
    %c3_175 = arith.constant 3 : index
    %c4_176 = arith.constant 4 : index
    %c0_177 = arith.constant 0 : index
    %c0_178 = arith.constant 0 : index
    %229 = vector.load %arg5[%c3_175, %c4_176, %c0_177, %c0_178] : memref<4x8x2x32xf32, #tpu.memory_space<vmem>>, vector<1x1x2x32xf32>
    %230 = vector.shape_cast %229 : vector<1x1x2x32xf32> to vector<2x32xf32>
    %cst_179 = arith.constant dense<0.000000e+00> : vector<2x32xf32>
    %231 = tpu.matmul %213, %52, %cst_179 {dimension_numbers = #tpu.dot_dimension_numbers<[1], [0], [0], [1], [0, 0, 1, 1], [], []>} : vector<2x32xf32>, vector<32x32xf32>, vector<2x32xf32> -> vector<2x32xf32>
    %232 = arith.addf %230, %231 : vector<2x32xf32>
    %233 = arith.negf %220 : vector<2x32xf32>
    %234 = math.exp %233 : vector<2x32xf32>
    %cst_180 = arith.constant 1.000000e+00 : f32
    %235 = vector.broadcast %cst_180 : f32 to vector<2x32xf32>
    %236 = arith.addf %235, %234 : vector<2x32xf32>
    %237 = arith.divf %235, %236 : vector<2x32xf32>
    %238 = arith.negf %224 : vector<2x32xf32>
    %239 = math.exp %238 : vector<2x32xf32>
    %cst_181 = arith.constant 1.000000e+00 : f32
    %240 = vector.broadcast %cst_181 : f32 to vector<2x32xf32>
    %241 = arith.addf %240, %239 : vector<2x32xf32>
    %242 = arith.divf %240, %241 : vector<2x32xf32>
    %243 = math.tanh %228 : vector<2x32xf32>
    %244 = arith.negf %232 : vector<2x32xf32>
    %245 = math.exp %244 : vector<2x32xf32>
    %cst_182 = arith.constant 1.000000e+00 : f32
    %246 = vector.broadcast %cst_182 : f32 to vector<2x32xf32>
    %247 = arith.addf %246, %245 : vector<2x32xf32>
    %248 = arith.divf %246, %247 : vector<2x32xf32>
    %249 = arith.mulf %242, %211 : vector<2x32xf32>
    %250 = arith.mulf %237, %243 : vector<2x32xf32>
    %251 = arith.addf %249, %250 : vector<2x32xf32>
    %252 = math.tanh %251 : vector<2x32xf32>
    %253 = arith.mulf %248, %252 : vector<2x32xf32>
    %c4_183 = arith.constant 4 : index
    %c0_184 = arith.constant 0 : index
    %c0_185 = arith.constant 0 : index
    %254 = vector.load %arg3[%c4_183, %c0_184, %c0_185] : memref<8x2x32xf32, #tpu.memory_space<vmem>>, vector<1x2x32xf32>
    %255 = vector.shape_cast %254 : vector<1x2x32xf32> to vector<2x32xf32>
    %256 = vector.shape_cast %253 : vector<2x32xf32> to vector<1x2x32xf32>
    tpu.vector_store %arg3[%c4_183, %c0_184, %c0_185], %256 {strides = array<i32>} : memref<8x2x32xf32, #tpu.memory_space<vmem>>, vector<1x2x32xf32>,
    %c0_186 = arith.constant 0 : index
    %c5 = arith.constant 5 : index
    %c0_187 = arith.constant 0 : index
    %c0_188 = arith.constant 0 : index
    %257 = vector.load %arg5[%c0_186, %c5, %c0_187, %c0_188] : memref<4x8x2x32xf32, #tpu.memory_space<vmem>>, vector<1x1x2x32xf32>
    %258 = vector.shape_cast %257 : vector<1x1x2x32xf32> to vector<2x32xf32>
    %cst_189 = arith.constant dense<0.000000e+00> : vector<2x32xf32>
    %259 = tpu.matmul %253, %46, %cst_189 {dimension_numbers = #tpu.dot_dimension_numbers<[1], [0], [0], [1], [0, 0, 1, 1], [], []>} : vector<2x32xf32>, vector<32x32xf32>, vector<2x32xf32> -> vector<2x32xf32>
    %260 = arith.addf %258, %259 : vector<2x32xf32>
    %c1_190 = arith.constant 1 : index
    %c5_191 = arith.constant 5 : index
    %c0_192 = arith.constant 0 : index
    %c0_193 = arith.constant 0 : index
    %261 = vector.load %arg5[%c1_190, %c5_191, %c0_192, %c0_193] : memref<4x8x2x32xf32, #tpu.memory_space<vmem>>, vector<1x1x2x32xf32>
    %262 = vector.shape_cast %261 : vector<1x1x2x32xf32> to vector<2x32xf32>
    %cst_194 = arith.constant dense<0.000000e+00> : vector<2x32xf32>
    %263 = tpu.matmul %253, %48, %cst_194 {dimension_numbers = #tpu.dot_dimension_numbers<[1], [0], [0], [1], [0, 0, 1, 1], [], []>} : vector<2x32xf32>, vector<32x32xf32>, vector<2x32xf32> -> vector<2x32xf32>
    %264 = arith.addf %262, %263 : vector<2x32xf32>
    %c2_195 = arith.constant 2 : index
    %c5_196 = arith.constant 5 : index
    %c0_197 = arith.constant 0 : index
    %c0_198 = arith.constant 0 : index
    %265 = vector.load %arg5[%c2_195, %c5_196, %c0_197, %c0_198] : memref<4x8x2x32xf32, #tpu.memory_space<vmem>>, vector<1x1x2x32xf32>
    %266 = vector.shape_cast %265 : vector<1x1x2x32xf32> to vector<2x32xf32>
    %cst_199 = arith.constant dense<0.000000e+00> : vector<2x32xf32>
    %267 = tpu.matmul %253, %50, %cst_199 {dimension_numbers = #tpu.dot_dimension_numbers<[1], [0], [0], [1], [0, 0, 1, 1], [], []>} : vector<2x32xf32>, vector<32x32xf32>, vector<2x32xf32> -> vector<2x32xf32>
    %268 = arith.addf %266, %267 : vector<2x32xf32>
    %c3_200 = arith.constant 3 : index
    %c5_201 = arith.constant 5 : index
    %c0_202 = arith.constant 0 : index
    %c0_203 = arith.constant 0 : index
    %269 = vector.load %arg5[%c3_200, %c5_201, %c0_202, %c0_203] : memref<4x8x2x32xf32, #tpu.memory_space<vmem>>, vector<1x1x2x32xf32>
    %270 = vector.shape_cast %269 : vector<1x1x2x32xf32> to vector<2x32xf32>
    %cst_204 = arith.constant dense<0.000000e+00> : vector<2x32xf32>
    %271 = tpu.matmul %253, %52, %cst_204 {dimension_numbers = #tpu.dot_dimension_numbers<[1], [0], [0], [1], [0, 0, 1, 1], [], []>} : vector<2x32xf32>, vector<32x32xf32>, vector<2x32xf32> -> vector<2x32xf32>
    %272 = arith.addf %270, %271 : vector<2x32xf32>
    %273 = arith.negf %260 : vector<2x32xf32>
    %274 = math.exp %273 : vector<2x32xf32>
    %cst_205 = arith.constant 1.000000e+00 : f32
    %275 = vector.broadcast %cst_205 : f32 to vector<2x32xf32>
    %276 = arith.addf %275, %274 : vector<2x32xf32>
    %277 = arith.divf %275, %276 : vector<2x32xf32>
    %278 = arith.negf %264 : vector<2x32xf32>
    %279 = math.exp %278 : vector<2x32xf32>
    %cst_206 = arith.constant 1.000000e+00 : f32
    %280 = vector.broadcast %cst_206 : f32 to vector<2x32xf32>
    %281 = arith.addf %280, %279 : vector<2x32xf32>
    %282 = arith.divf %280, %281 : vector<2x32xf32>
    %283 = math.tanh %268 : vector<2x32xf32>
    %284 = arith.negf %272 : vector<2x32xf32>
    %285 = math.exp %284 : vector<2x32xf32>
    %cst_207 = arith.constant 1.000000e+00 : f32
    %286 = vector.broadcast %cst_207 : f32 to vector<2x32xf32>
    %287 = arith.addf %286, %285 : vector<2x32xf32>
    %288 = arith.divf %286, %287 : vector<2x32xf32>
    %289 = arith.mulf %282, %251 : vector<2x32xf32>
    %290 = arith.mulf %277, %283 : vector<2x32xf32>
    %291 = arith.addf %289, %290 : vector<2x32xf32>
    %292 = math.tanh %291 : vector<2x32xf32>
    %293 = arith.mulf %288, %292 : vector<2x32xf32>
    %c5_208 = arith.constant 5 : index
    %c0_209 = arith.constant 0 : index
    %c0_210 = arith.constant 0 : index
    %294 = vector.load %arg3[%c5_208, %c0_209, %c0_210] : memref<8x2x32xf32, #tpu.memory_space<vmem>>, vector<1x2x32xf32>
    %295 = vector.shape_cast %294 : vector<1x2x32xf32> to vector<2x32xf32>
    %296 = vector.shape_cast %293 : vector<2x32xf32> to vector<1x2x32xf32>
    tpu.vector_store %arg3[%c5_208, %c0_209, %c0_210], %296 {strides = array<i32>} : memref<8x2x32xf32, #tpu.memory_space<vmem>>, vector<1x2x32xf32>,
    %c0_211 = arith.constant 0 : index
    %c6 = arith.constant 6 : index
    %c0_212 = arith.constant 0 : index
    %c0_213 = arith.constant 0 : index
    %297 = vector.load %arg5[%c0_211, %c6, %c0_212, %c0_213] : memref<4x8x2x32xf32, #tpu.memory_space<vmem>>, vector<1x1x2x32xf32>
    %298 = vector.shape_cast %297 : vector<1x1x2x32xf32> to vector<2x32xf32>
    %cst_214 = arith.constant dense<0.000000e+00> : vector<2x32xf32>
    %299 = tpu.matmul %293, %46, %cst_214 {dimension_numbers = #tpu.dot_dimension_numbers<[1], [0], [0], [1], [0, 0, 1, 1], [], []>} : vector<2x32xf32>, vector<32x32xf32>, vector<2x32xf32> -> vector<2x32xf32>
    %300 = arith.addf %298, %299 : vector<2x32xf32>
    %c1_215 = arith.constant 1 : index
    %c6_216 = arith.constant 6 : index
    %c0_217 = arith.constant 0 : index
    %c0_218 = arith.constant 0 : index
    %301 = vector.load %arg5[%c1_215, %c6_216, %c0_217, %c0_218] : memref<4x8x2x32xf32, #tpu.memory_space<vmem>>, vector<1x1x2x32xf32>
    %302 = vector.shape_cast %301 : vector<1x1x2x32xf32> to vector<2x32xf32>
    %cst_219 = arith.constant dense<0.000000e+00> : vector<2x32xf32>
    %303 = tpu.matmul %293, %48, %cst_219 {dimension_numbers = #tpu.dot_dimension_numbers<[1], [0], [0], [1], [0, 0, 1, 1], [], []>} : vector<2x32xf32>, vector<32x32xf32>, vector<2x32xf32> -> vector<2x32xf32>
    %304 = arith.addf %302, %303 : vector<2x32xf32>
    %c2_220 = arith.constant 2 : index
    %c6_221 = arith.constant 6 : index
    %c0_222 = arith.constant 0 : index
    %c0_223 = arith.constant 0 : index
    %305 = vector.load %arg5[%c2_220, %c6_221, %c0_222, %c0_223] : memref<4x8x2x32xf32, #tpu.memory_space<vmem>>, vector<1x1x2x32xf32>
    %306 = vector.shape_cast %305 : vector<1x1x2x32xf32> to vector<2x32xf32>
    %cst_224 = arith.constant dense<0.000000e+00> : vector<2x32xf32>
    %307 = tpu.matmul %293, %50, %cst_224 {dimension_numbers = #tpu.dot_dimension_numbers<[1], [0], [0], [1], [0, 0, 1, 1], [], []>} : vector<2x32xf32>, vector<32x32xf32>, vector<2x32xf32> -> vector<2x32xf32>
    %308 = arith.addf %306, %307 : vector<2x32xf32>
    %c3_225 = arith.constant 3 : index
    %c6_226 = arith.constant 6 : index
    %c0_227 = arith.constant 0 : index
    %c0_228 = arith.constant 0 : index
    %309 = vector.load %arg5[%c3_225, %c6_226, %c0_227, %c0_228] : memref<4x8x2x32xf32, #tpu.memory_space<vmem>>, vector<1x1x2x32xf32>
    %310 = vector.shape_cast %309 : vector<1x1x2x32xf32> to vector<2x32xf32>
    %cst_229 = arith.constant dense<0.000000e+00> : vector<2x32xf32>
    %311 = tpu.matmul %293, %52, %cst_229 {dimension_numbers = #tpu.dot_dimension_numbers<[1], [0], [0], [1], [0, 0, 1, 1], [], []>} : vector<2x32xf32>, vector<32x32xf32>, vector<2x32xf32> -> vector<2x32xf32>
    %312 = arith.addf %310, %311 : vector<2x32xf32>
    %313 = arith.negf %300 : vector<2x32xf32>
    %314 = math.exp %313 : vector<2x32xf32>
    %cst_230 = arith.constant 1.000000e+00 : f32
    %315 = vector.broadcast %cst_230 : f32 to vector<2x32xf32>
    %316 = arith.addf %315, %314 : vector<2x32xf32>
    %317 = arith.divf %315, %316 : vector<2x32xf32>
    %318 = arith.negf %304 : vector<2x32xf32>
    %319 = math.exp %318 : vector<2x32xf32>
    %cst_231 = arith.constant 1.000000e+00 : f32
    %320 = vector.broadcast %cst_231 : f32 to vector<2x32xf32>
    %321 = arith.addf %320, %319 : vector<2x32xf32>
    %322 = arith.divf %320, %321 : vector<2x32xf32>
    %323 = math.tanh %308 : vector<2x32xf32>
    %324 = arith.negf %312 : vector<2x32xf32>
    %325 = math.exp %324 : vector<2x32xf32>
    %cst_232 = arith.constant 1.000000e+00 : f32
    %326 = vector.broadcast %cst_232 : f32 to vector<2x32xf32>
    %327 = arith.addf %326, %325 : vector<2x32xf32>
    %328 = arith.divf %326, %327 : vector<2x32xf32>
    %329 = arith.mulf %322, %291 : vector<2x32xf32>
    %330 = arith.mulf %317, %323 : vector<2x32xf32>
    %331 = arith.addf %329, %330 : vector<2x32xf32>
    %332 = math.tanh %331 : vector<2x32xf32>
    %333 = arith.mulf %328, %332 : vector<2x32xf32>
    %c6_233 = arith.constant 6 : index
    %c0_234 = arith.constant 0 : index
    %c0_235 = arith.constant 0 : index
    %334 = vector.load %arg3[%c6_233, %c0_234, %c0_235] : memref<8x2x32xf32, #tpu.memory_space<vmem>>, vector<1x2x32xf32>
    %335 = vector.shape_cast %334 : vector<1x2x32xf32> to vector<2x32xf32>
    %336 = vector.shape_cast %333 : vector<2x32xf32> to vector<1x2x32xf32>
    tpu.vector_store %arg3[%c6_233, %c0_234, %c0_235], %336 {strides = array<i32>} : memref<8x2x32xf32, #tpu.memory_space<vmem>>, vector<1x2x32xf32>,
    %c0_236 = arith.constant 0 : index
    %c7 = arith.constant 7 : index
    %c0_237 = arith.constant 0 : index
    %c0_238 = arith.constant 0 : index
    %337 = vector.load %arg5[%c0_236, %c7, %c0_237, %c0_238] : memref<4x8x2x32xf32, #tpu.memory_space<vmem>>, vector<1x1x2x32xf32>
    %338 = vector.shape_cast %337 : vector<1x1x2x32xf32> to vector<2x32xf32>
    %cst_239 = arith.constant dense<0.000000e+00> : vector<2x32xf32>
    %339 = tpu.matmul %333, %46, %cst_239 {dimension_numbers = #tpu.dot_dimension_numbers<[1], [0], [0], [1], [0, 0, 1, 1], [], []>} : vector<2x32xf32>, vector<32x32xf32>, vector<2x32xf32> -> vector<2x32xf32>
    %340 = arith.addf %338, %339 : vector<2x32xf32>
    %c1_240 = arith.constant 1 : index
    %c7_241 = arith.constant 7 : index
    %c0_242 = arith.constant 0 : index
    %c0_243 = arith.constant 0 : index
    %341 = vector.load %arg5[%c1_240, %c7_241, %c0_242, %c0_243] : memref<4x8x2x32xf32, #tpu.memory_space<vmem>>, vector<1x1x2x32xf32>
    %342 = vector.shape_cast %341 : vector<1x1x2x32xf32> to vector<2x32xf32>
    %cst_244 = arith.constant dense<0.000000e+00> : vector<2x32xf32>
    %343 = tpu.matmul %333, %48, %cst_244 {dimension_numbers = #tpu.dot_dimension_numbers<[1], [0], [0], [1], [0, 0, 1, 1], [], []>} : vector<2x32xf32>, vector<32x32xf32>, vector<2x32xf32> -> vector<2x32xf32>
    %344 = arith.addf %342, %343 : vector<2x32xf32>
    %c2_245 = arith.constant 2 : index
    %c7_246 = arith.constant 7 : index
    %c0_247 = arith.constant 0 : index
    %c0_248 = arith.constant 0 : index
    %345 = vector.load %arg5[%c2_245, %c7_246, %c0_247, %c0_248] : memref<4x8x2x32xf32, #tpu.memory_space<vmem>>, vector<1x1x2x32xf32>
    %346 = vector.shape_cast %345 : vector<1x1x2x32xf32> to vector<2x32xf32>
    %cst_249 = arith.constant dense<0.000000e+00> : vector<2x32xf32>
    %347 = tpu.matmul %333, %50, %cst_249 {dimension_numbers = #tpu.dot_dimension_numbers<[1], [0], [0], [1], [0, 0, 1, 1], [], []>} : vector<2x32xf32>, vector<32x32xf32>, vector<2x32xf32> -> vector<2x32xf32>
    %348 = arith.addf %346, %347 : vector<2x32xf32>
    %c3_250 = arith.constant 3 : index
    %c7_251 = arith.constant 7 : index
    %c0_252 = arith.constant 0 : index
    %c0_253 = arith.constant 0 : index
    %349 = vector.load %arg5[%c3_250, %c7_251, %c0_252, %c0_253] : memref<4x8x2x32xf32, #tpu.memory_space<vmem>>, vector<1x1x2x32xf32>
    %350 = vector.shape_cast %349 : vector<1x1x2x32xf32> to vector<2x32xf32>
    %cst_254 = arith.constant dense<0.000000e+00> : vector<2x32xf32>
    %351 = tpu.matmul %333, %52, %cst_254 {dimension_numbers = #tpu.dot_dimension_numbers<[1], [0], [0], [1], [0, 0, 1, 1], [], []>} : vector<2x32xf32>, vector<32x32xf32>, vector<2x32xf32> -> vector<2x32xf32>
    %352 = arith.addf %350, %351 : vector<2x32xf32>
    %353 = arith.negf %340 : vector<2x32xf32>
    %354 = math.exp %353 : vector<2x32xf32>
    %cst_255 = arith.constant 1.000000e+00 : f32
    %355 = vector.broadcast %cst_255 : f32 to vector<2x32xf32>
    %356 = arith.addf %355, %354 : vector<2x32xf32>
    %357 = arith.divf %355, %356 : vector<2x32xf32>
    %358 = arith.negf %344 : vector<2x32xf32>
    %359 = math.exp %358 : vector<2x32xf32>
    %cst_256 = arith.constant 1.000000e+00 : f32
    %360 = vector.broadcast %cst_256 : f32 to vector<2x32xf32>
    %361 = arith.addf %360, %359 : vector<2x32xf32>
    %362 = arith.divf %360, %361 : vector<2x32xf32>
    %363 = math.tanh %348 : vector<2x32xf32>
    %364 = arith.negf %352 : vector<2x32xf32>
    %365 = math.exp %364 : vector<2x32xf32>
    %cst_257 = arith.constant 1.000000e+00 : f32
    %366 = vector.broadcast %cst_257 : f32 to vector<2x32xf32>
    %367 = arith.addf %366, %365 : vector<2x32xf32>
    %368 = arith.divf %366, %367 : vector<2x32xf32>
    %369 = arith.mulf %362, %331 : vector<2x32xf32>
    %370 = arith.mulf %357, %363 : vector<2x32xf32>
    %371 = arith.addf %369, %370 : vector<2x32xf32>
    %372 = math.tanh %371 : vector<2x32xf32>
    %373 = arith.mulf %368, %372 : vector<2x32xf32>
    %c7_258 = arith.constant 7 : index
    %c0_259 = arith.constant 0 : index
    %c0_260 = arith.constant 0 : index
    %374 = vector.load %arg3[%c7_258, %c0_259, %c0_260] : memref<8x2x32xf32, #tpu.memory_space<vmem>>, vector<1x2x32xf32>
    %375 = vector.shape_cast %374 : vector<1x2x32xf32> to vector<2x32xf32>
    %376 = vector.shape_cast %373 : vector<2x32xf32> to vector<1x2x32xf32>
    tpu.vector_store %arg3[%c7_258, %c0_259, %c0_260], %376 {strides = array<i32>} : memref<8x2x32xf32, #tpu.memory_space<vmem>>, vector<1x2x32xf32>,
    %c0_261 = arith.constant 0 : index
    %c0_262 = arith.constant 0 : index
    %c0_263 = arith.constant 0 : index
    %377 = vector.load %arg4[%c0_261, %c0_262, %c0_263] : memref<2x2x32xf32, #tpu.memory_space<vmem>>, vector<1x2x32xf32>
    %378 = vector.shape_cast %377 : vector<1x2x32xf32> to vector<2x32xf32>
    %379 = vector.shape_cast %373 : vector<2x32xf32> to vector<1x2x32xf32>
    tpu.vector_store %arg4[%c0_261, %c0_262, %c0_263], %379 {strides = array<i32>} : memref<2x2x32xf32, #tpu.memory_space<vmem>>, vector<1x2x32xf32>,
    %c1_264 = arith.constant 1 : index
    %c0_265 = arith.constant 0 : index
    %c0_266 = arith.constant 0 : index
    %380 = vector.load %arg4[%c1_264, %c0_265, %c0_266] : memref<2x2x32xf32, #tpu.memory_space<vmem>>, vector<1x2x32xf32>
    %381 = vector.shape_cast %380 : vector<1x2x32xf32> to vector<2x32xf32>
    %382 = vector.shape_cast %371 : vector<2x32xf32> to vector<1x2x32xf32>
    tpu.vector_store %arg4[%c1_264, %c0_265, %c0_266], %382 {strides = array<i32>} : memref<2x2x32xf32, #tpu.memory_space<vmem>>, vector<1x2x32xf32>,
    return
  }
}

</mosaic_0001>

<llo_original>
// kernel: tpu_custom_call.1
$region0: #{tpu_custom_call.1}
  #allocation0 [shape = 'u32[]', space=smem, size = 0x4, offset = 0x4, fixed_abs, tag = 'smem constant byte address 0x4 - core index']
  #allocation1 [shape = 'u32[72,128]{1,0:T(1,128)}', space=vmem, size = 0x9000, scoped, tag = 'internal scratch']
  #allocation2 [shape = 'f32[4,8,2,32]{3,2,1,0:T(2,128)}', space=vmem, size = 0x8000, scoped, tag = 'scratch operand']
  %s0 = inlined_call_operand.vmem [shape: f32[16,8], index: 0, kind: input, shape index: {}]
  %s1 = inlined_call_operand.vmem [shape: f32[4,41,32], index: 1, kind: input, shape index: {}]
  %s2 = inlined_call_operand.vmem [shape: f32[2,2,32], index: 2, kind: input, shape index: {}]
  %s3 = inlined_call_operand.hbm [shape: f32[8,2,32], index: 3, kind: output, shape index: {0}]
  %s4 = inlined_call_operand.hbm [shape: f32[2,2,32], index: 4, kind: output, shape index: {1}]
  %5 = xla_tuple %s3, %s4
  %s6 = sld [smem:[#allocation0]]
  $region30: #{tpu_custom_call.1} parent=0
    _
  %s8 = ssub.s32 1, %s6
  %s9 = scalar_select 0, %s8, %s6
  $region1: #{tpu_custom_call.1} parent=0
    #allocation3 [shape = 'u8[8192]{0}', space=vmem, size = 0x2000, scoped, tag = 'output window, operand 0, single buffered']
    #allocation4 [shape = 's32[1]{0}', space=sflag, size = 0x4, scoped, tag = 'scoped memory for tpu_custom_call.1']
    #allocation5 [shape = 'u8[2048]{0}', space=vmem, size = 0x800, scoped, tag = 'output window, operand 1, single buffered']
    #allocation6 [shape = 's32[1]{0}', space=sflag, size = 0x4, scoped, tag = 'scoped memory for tpu_custom_call.1']
    %10 = vsyncpa [#allocation4], 0
    %11 = vsyncpa [#allocation6], 0
    // Predicated region
    $region2: #{tpu_custom_call.1} parent=1 // pred_check
      _
    $region3: #{tpu_custom_call.1} parent=1 // pred_check_branch
      %13 = sbr.rel (0) target = $region5
    $region4: #{tpu_custom_call.1} parent=1 // pred_region
      _
    $region5: #{tpu_custom_call.1} parent=1 // pred_fallthru
      _
    // Predicated region
    $region6: #{tpu_custom_call.1} parent=1 // pred_check
      _
    $region7: #{tpu_custom_call.1} parent=1 // pred_check_branch
      %15 = sbr.rel (0) target = $region9
    $region8: #{tpu_custom_call.1} parent=1 // pred_region
      _
    $region9: #{tpu_custom_call.1} parent=1 // pred_fallthru
      _
    // Predicated region
    $region10: #{tpu_custom_call.1} parent=1 // pred_check
      _
    $region11: #{tpu_custom_call.1} parent=1 // pred_check_branch
      %17 = sbr.rel (0) target = $region13
    $region12: #{tpu_custom_call.1} parent=1 // pred_region
      _
    $region13: #{tpu_custom_call.1} parent=1 // pred_fallthru
      _
    %v18 = vld [vmem:[%s0] sm:$0xff]
    %v19 = vld [vmem:[%s0 + $0x8] sm:$0xff]
    %v20 = vld [vmem:[%s1] sm:$0xff]
    %v21 = vld [vmem:[%s1 + $0x28] sm:$0x1]
    %v22 = vperm.slane %v21, 0
    %vm23 = vcmask 64512
    %v25 = vsel %vm23, %v18, 0
    %v28 = vsel %vm23, %v19, 0
    %30 = vmatpush.msra.mxu0 0.0
    %31 = vmatpush.msra.mxu0 0.0
    %32 = vmatpush.msra.mxu0 0.0
    %33 = vmatpush.msra.mxu0 0.0
    %34 = vmatpush.msra.mxu0 0.0
    %35 = vmatpush.msra.mxu0 0.0
    %36 = vmatpush.msra.mxu0 0.0
    %37 = vmatpush.msra.mxu0 0.0
    %38 = vmatpush.msra.mxu0 0.0
    %39 = vmatpush.msra.mxu0 0.0
    %40 = vmatpush.msra.mxu0 0.0
    %41 = vmatpush.msra.mxu0 0.0
    %42 = vmatpush.msra.mxu0 0.0
    %43 = vmatpush.msra.mxu0 0.0
    %44 = vmatpush.msra.mxu0 0.0
    %45 = vmatpush.msra.mxu0 %v20
    %46 = vmatmul.f32.gmra.mxu0 %v25
    %v47 = vpop.f32.mrf.mxu0
    %v48 = vadd.f32 %v22, %v47
    %49 = vmatmul.f32.gmra.mxu0 %v28
    %v50 = vpop.f32.mrf.mxu0
    %v51 = vadd.f32 %v22, %v50
    %52 = vdwg.mxu0
    %v55 = vrot.slane %v48, 2
    %v56 = vrot.slane %v48, 4
    %v57 = vrot.slane %v48, 6
    %v58 = vrot.slane %v51, 2
    %v59 = vrot.slane %v51, 4
    %v60 = vrot.slane %v51, 6
    %vm67 = vcmask 254976
    %68 = vst.msk [vmem:[#allocation2] sm:$0x3] %vm67, %v48
    %69 = vst.msk [vmem:[#allocation2 + $0x2] sm:$0x3] %vm67, %v55
    %70 = vst.msk [vmem:[#allocation2 + $0x4] sm:$0x3] %vm67, %v56
    %71 = vst.msk [vmem:[#allocation2 + $0x6] sm:$0x3] %vm67, %v57
    %72 = vst.msk [vmem:[#allocation2 + $0x8] sm:$0x3] %vm67, %v51
    %73 = vst.msk [vmem:[#allocation2 + $0xa] sm:$0x3] %vm67, %v58
    %74 = vst.msk [vmem:[#allocation2 + $0xc] sm:$0x3] %vm67, %v59
    %75 = vst.msk [vmem:[#allocation2 + $0xe] sm:$0x3] %vm67, %v60
    %s76 = scalar_lea.vmem %s1, 48
    %v77 = vld [vmem:[%s76] sm:$0xff]
    %v78 = vld [vmem:[%s76 + $0x28] sm:$0x1]
    %v79 = vperm.slane %v78, 0
    %80 = vmatpush.msra.mxu0 0.0
    %81 = vmatpush.msra.mxu0 0.0
    %82 = vmatpush.msra.mxu0 0.0
    %83 = vmatpush.msra.mxu0 0.0
    %84 = vmatpush.msra.mxu0 0.0
    %85 = vmatpush.msra.mxu0 0.0
    %86 = vmatpush.msra.mxu0 0.0
    %87 = vmatpush.msra.mxu0 0.0
    %88 = vmatpush.msra.mxu0 0.0
    %89 = vmatpush.msra.mxu0 0.0
    %90 = vmatpush.msra.mxu0 0.0
    %91 = vmatpush.msra.mxu0 0.0
    %92 = vmatpush.msra.mxu0 0.0
    %93 = vmatpush.msra.mxu0 0.0
    %94 = vmatpush.msra.mxu0 0.0
    %95 = vmatpush.msra.mxu0 %v77
    %96 = vmatmul.f32.gmra.mxu0 %v25
    %v97 = vpop.f32.mrf.mxu0
    %v98 = vadd.f32 %v79, %v97
    %99 = vmatmul.f32.gmra.mxu0 %v28
    %v100 = vpop.f32.mrf.mxu0
    %v101 = vadd.f32 %v79, %v100
    %102 = vdwg.mxu0
    %v105 = vrot.slane %v98, 2
    %v106 = vrot.slane %v98, 4
    %v107 = vrot.slane %v98, 6
    %v108 = vrot.slane %v101, 2
    %v109 = vrot.slane %v101, 4
    %v110 = vrot.slane %v101, 6
    %s117 = scalar_lea.vmem [#allocation2], 16
    %118 = vst.msk [vmem:[%s117] sm:$0x3] %vm67, %v98
    %119 = vst.msk [vmem:[%s117 + $0x2] sm:$0x3] %vm67, %v105
    %120 = vst.msk [vmem:[%s117 + $0x4] sm:$0x3] %vm67, %v106
    %121 = vst.msk [vmem:[%s117 + $0x6] sm:$0x3] %vm67, %v107
    %122 = vst.msk [vmem:[%s117 + $0x8] sm:$0x3] %vm67, %v101
    %123 = vst.msk [vmem:[%s117 + $0xa] sm:$0x3] %vm67, %v108
    %124 = vst.msk [vmem:[%s117 + $0xc] sm:$0x3] %vm67, %v109
    %125 = vst.msk [vmem:[%s117 + $0xe] sm:$0x3] %vm67, %v110
    %s126 = scalar_lea.vmem %s1, 96
    %v127 = vld [vmem:[%s126] sm:$0xff]
    %v128 = vld [vmem:[%s126 + $0x28] sm:$0x1]
    %v129 = vperm.slane %v128, 0
    %130 = vmatpush.msra.mxu0 0.0
    %131 = vmatpush.msra.mxu0 0.0
    %132 = vmatpush.msra.mxu0 0.0
    %133 = vmatpush.msra.mxu0 0.0
    %134 = vmatpush.msra.mxu0 0.0
    %135 = vmatpush.msra.mxu0 0.0
    %136 = vmatpush.msra.mxu0 0.0
    %137 = vmatpush.msra.mxu0 0.0
    %138 = vmatpush.msra.mxu0 0.0
    %139 = vmatpush.msra.mxu0 0.0
    %140 = vmatpush.msra.mxu0 0.0
    %141 = vmatpush.msra.mxu0 0.0
    %142 = vmatpush.msra.mxu0 0.0
    %143 = vmatpush.msra.mxu0 0.0
    %144 = vmatpush.msra.mxu0 0.0
    %145 = vmatpush.msra.mxu0 %v127
    %146 = vmatmul.f32.gmra.mxu0 %v25
    %v147 = vpop.f32.mrf.mxu0
    %v148 = vadd.f32 %v129, %v147
    %149 = vmatmul.f32.gmra.mxu0 %v28
    %v150 = vpop.f32.mrf.mxu0
    %v151 = vadd.f32 %v129, %v150
    %152 = vdwg.mxu0
    %v155 = vrot.slane %v148, 2
    %v156 = vrot.slane %v148, 4
    %v157 = vrot.slane %v148, 6
    %v158 = vrot.slane %v151, 2
    %v159 = vrot.slane %v151, 4
    %v160 = vrot.slane %v151, 6
    %s167 = scalar_lea.vmem [#allocation2], 32
    %168 = vst.msk [vmem:[%s167] sm:$0x3] %vm67, %v148
    %169 = vst.msk [vmem:[%s167 + $0x2] sm:$0x3] %vm67, %v155
    %170 = vst.msk [vmem:[%s167 + $0x4] sm:$0x3] %vm67, %v156
    %171 = vst.msk [vmem:[%s167 + $0x6] sm:$0x3] %vm67, %v157
    %172 = vst.msk [vmem:[%s167 + $0x8] sm:$0x3] %vm67, %v151
    %173 = vst.msk [vmem:[%s167 + $0xa] sm:$0x3] %vm67, %v158
    %174 = vst.msk [vmem:[%s167 + $0xc] sm:$0x3] %vm67, %v159
    %175 = vst.msk [vmem:[%s167 + $0xe] sm:$0x3] %vm67, %v160
    %s176 = scalar_lea.vmem %s1, 144
    %v177 = vld [vmem:[%s176] sm:$0xff]
    %v178 = vld [vmem:[%s176 + $0x28] sm:$0x1]
    %v179 = vperm.slane %v178, 0
    %180 = vmatpush.msra.mxu0 0.0
    %181 = vmatpush.msra.mxu0 0.0
    %182 = vmatpush.msra.mxu0 0.0
    %183 = vmatpush.msra.mxu0 0.0
    %184 = vmatpush.msra.mxu0 0.0
    %185 = vmatpush.msra.mxu0 0.0
    %186 = vmatpush.msra.mxu0 0.0
    %187 = vmatpush.msra.mxu0 0.0
    %188 = vmatpush.msra.mxu0 0.0
    %189 = vmatpush.msra.mxu0 0.0
    %190 = vmatpush.msra.mxu0 0.0
    %191 = vmatpush.msra.mxu0 0.0
    %192 = vmatpush.msra.mxu0 0.0
    %193 = vmatpush.msra.mxu0 0.0
    %194 = vmatpush.msra.mxu0 0.0
    %195 = vmatpush.msra.mxu0 %v177
    %196 = vmatmul.f32.gmra.mxu0 %v25
    %v197 = vpop.f32.mrf.mxu0
    %v198 = vadd.f32 %v179, %v197
    %199 = vmatmul.f32.gmra.mxu0 %v28
    %v200 = vpop.f32.mrf.mxu0
    %v201 = vadd.f32 %v179, %v200
    %202 = vdwg.mxu0
    %v205 = vrot.slane %v198, 2
    %v206 = vrot.slane %v198, 4
    %v207 = vrot.slane %v198, 6
    %v208 = vrot.slane %v201, 2
    %v209 = vrot.slane %v201, 4
    %v210 = vrot.slane %v201, 6
    %s217 = scalar_lea.vmem [#allocation2], 48
    %218 = vst.msk [vmem:[%s217] sm:$0x3] %vm67, %v198
    %219 = vst.msk [vmem:[%s217 + $0x2] sm:$0x3] %vm67, %v205
    %220 = vst.msk [vmem:[%s217 + $0x4] sm:$0x3] %vm67, %v206
    %221 = vst.msk [vmem:[%s217 + $0x6] sm:$0x3] %vm67, %v207
    %222 = vst.msk [vmem:[%s217 + $0x8] sm:$0x3] %vm67, %v201
    %223 = vst.msk [vmem:[%s217 + $0xa] sm:$0x3] %vm67, %v208
    %224 = vst.msk [vmem:[%s217 + $0xc] sm:$0x3] %vm67, %v209
    %225 = vst.msk [vmem:[%s217 + $0xe] sm:$0x3] %vm67, %v210
    %v226 = vld [vmem:[%s1 + $0x8] sm:$0xff]
    %v227 = vld [vmem:[%s1 + $0x10] sm:$0xff]
    %v228 = vld [vmem:[%s1 + $0x18] sm:$0xff]
    %v229 = vld [vmem:[%s1 + $0x20] sm:$0xff]
    %v230 = vld [vmem:[%s76 + $0x8] sm:$0xff]
    %v231 = vld [vmem:[%s76 + $0x10] sm:$0xff]
    %v232 = vld [vmem:[%s76 + $0x18] sm:$0xff]
    %v233 = vld [vmem:[%s76 + $0x20] sm:$0xff]
    %v234 = vld [vmem:[%s126 + $0x8] sm:$0xff]
    %v235 = vld [vmem:[%s126 + $0x10] sm:$0xff]
    %v236 = vld [vmem:[%s126 + $0x18] sm:$0xff]
    %v237 = vld [vmem:[%s126 + $0x20] sm:$0xff]
    %v238 = vld [vmem:[%s176 + $0x8] sm:$0xff]
    %v239 = vld [vmem:[%s176 + $0x10] sm:$0xff]
    %v240 = vld [vmem:[%s176 + $0x18] sm:$0xff]
    %v241 = vld [vmem:[%s176 + $0x20] sm:$0xff]
    %v242 = vld [vmem:[%s2] sm:$0x3]
    %s243 = scalar_lea.vmem %s2, 2
    %v244 = vld [vmem:[%s243] sm:$0x3]
    %v245 = vld [vmem:[#allocation2] sm:$0x3]
    %vm246 = vcmask 261120
    %v248 = vsel %vm246, %v242, 0
    %250 = vmatpush.msra.mxu0 0.0
    %251 = vmatpush.msra.mxu0 0.0
    %252 = vmatpush.msra.mxu0 0.0
    %253 = vmatpush.msra.mxu0 0.0
    %254 = vmatpush.msra.mxu0 0.0
    %255 = vmatpush.msra.mxu0 0.0
    %256 = vmatpush.msra.mxu0 0.0
    %257 = vmatpush.msra.mxu0 0.0
    %258 = vmatpush.msra.mxu0 0.0
    %259 = vmatpush.msra.mxu0 0.0
    %260 = vmatpush.msra.mxu0 0.0
    %261 = vmatpush.msra.mxu0 0.0
    %262 = vmatpush.msra.mxu0 %v229
    %263 = vmatpush.msra.mxu0 %v228
    %264 = vmatpush.msra.mxu0 %v227
    %265 = vmatpush.msra.mxu0 %v226
    %266 = vmatmul.f32.gmra.mxu0 %v248
    %v267 = vpop.f32.mrf.mxu0
    %v268 = vadd.f32 0.0, %v267
    %269 = vdwg.mxu0
    %v270 = vadd.f32 %v245, %v268
    %v271 = vld [vmem:[%s117] sm:$0x3]
    %272 = vmatpush.msra.mxu0 0.0
    %273 = vmatpush.msra.mxu0 0.0
    %274 = vmatpush.msra.mxu0 0.0
    %275 = vmatpush.msra.mxu0 0.0
    %276 = vmatpush.msra.mxu0 0.0
    %277 = vmatpush.msra.mxu0 0.0
    %278 = vmatpush.msra.mxu0 0.0
    %279 = vmatpush.msra.mxu0 0.0
    %280 = vmatpush.msra.mxu0 0.0
    %281 = vmatpush.msra.mxu0 0.0
    %282 = vmatpush.msra.mxu0 0.0
    %283 = vmatpush.msra.mxu0 0.0
    %284 = vmatpush.msra.mxu0 %v233
    %285 = vmatpush.msra.mxu0 %v232
    %286 = vmatpush.msra.mxu0 %v231
    %287 = vmatpush.msra.mxu0 %v230
    %288 = vmatmul.f32.gmra.mxu0 %v248
    %v289 = vpop.f32.mrf.mxu0
    %v290 = vadd.f32 0.0, %v289
    %291 = vdwg.mxu0
    %v292 = vadd.f32 %v271, %v290
    %v293 = vld [vmem:[%s167] sm:$0x3]
    %294 = vmatpush.msra.mxu0 0.0
    %295 = vmatpush.msra.mxu0 0.0
    %296 = vmatpush.msra.mxu0 0.0
    %297 = vmatpush.msra.mxu0 0.0
    %298 = vmatpush.msra.mxu0 0.0
    %299 = vmatpush.msra.mxu0 0.0
    %300 = vmatpush.msra.mxu0 0.0
    %301 = vmatpush.msra.mxu0 0.0
    %302 = vmatpush.msra.mxu0 0.0
    %303 = vmatpush.msra.mxu0 0.0
    %304 = vmatpush.msra.mxu0 0.0
    %305 = vmatpush.msra.mxu0 0.0
    %306 = vmatpush.msra.mxu0 %v237
    %307 = vmatpush.msra.mxu0 %v236
    %308 = vmatpush.msra.mxu0 %v235
    %309 = vmatpush.msra.mxu0 %v234
    %310 = vmatmul.f32.gmra.mxu0 %v248
    %v311 = vpop.f32.mrf.mxu0
    %v312 = vadd.f32 0.0, %v311
    %313 = vdwg.mxu0
    %v314 = vadd.f32 %v293, %v312
    %v315 = vld [vmem:[%s217] sm:$0x3]
    %316 = vmatpush.msra.mxu0 0.0
    %317 = vmatpush.msra.mxu0 0.0
    %318 = vmatpush.msra.mxu0 0.0
    %319 = vmatpush.msra.mxu0 0.0
    %320 = vmatpush.msra.mxu0 0.0
    %321 = vmatpush.msra.mxu0 0.0
    %322 = vmatpush.msra.mxu0 0.0
    %323 = vmatpush.msra.mxu0 0.0
    %324 = vmatpush.msra.mxu0 0.0
    %325 = vmatpush.msra.mxu0 0.0
    %326 = vmatpush.msra.mxu0 0.0
    %327 = vmatpush.msra.mxu0 0.0
    %328 = vmatpush.msra.mxu0 %v241
    %329 = vmatpush.msra.mxu0 %v240
    %330 = vmatpush.msra.mxu0 %v239
    %331 = vmatpush.msra.mxu0 %v238
    %332 = vmatmul.f32.gmra.mxu0 %v248
    %v333 = vpop.f32.mrf.mxu0
    %v334 = vadd.f32 0.0, %v333
    %335 = vdwg.mxu0
    %v336 = vadd.f32 %v315, %v334
    %v337 = vxor.u32 %v270, 2147483648
    %v338 = vmul.f32 %v337, 1.442695
    %v339 = vpow.pop %v338
    %v340 = vadd.f32 %v339, 1.0
    %v341 = vrcp.pop %v340
    %v342 = vmul.f32 %v340, %v341
    %v343 = vsub.f32 1.0, %v342
    %v344 = vmul.f32 %v341, %v343
    %v345 = vadd.f32 %v341, %v344
    %vm346 = vweird.f32 %v340
    %vm347 = vweird.f32 %v341
    %vm348 = vmor %vm346, %vm347
    %v349 = vsel %vm348, %v341, %v345
    %v350 = vand.u32 2147483647, %v340
    %vm351 = vcmp.eq.f32.partialorder %v350, 8.507059e+37
    %v352 = vand.u32 %v340, 2147483648
    %v353 = vor.u32 1.1754944e-38, %v352
    %v354 = vsel %vm351, %v353, %v349
    %v355 = vmul.f32 1.0, %v354
    %v356 = vxor.u32 %v292, 2147483648
    %v357 = vmul.f32 %v356, 1.442695
    %v358 = vpow.pop %v357
    %v359 = vadd.f32 %v358, 1.0
    %v360 = vrcp.pop %v359
    %v361 = vmul.f32 %v359, %v360
    %v362 = vsub.f32 1.0, %v361
    %v363 = vmul.f32 %v360, %v362
    %v364 = vadd.f32 %v360, %v363
    %vm365 = vweird.f32 %v359
    %vm366 = vweird.f32 %v360
    %vm367 = vmor %vm365, %vm366
    %v368 = vsel %vm367, %v360, %v364
    %v369 = vand.u32 2147483647, %v359
    %vm370 = vcmp.eq.f32.partialorder %v369, 8.507059e+37
    %v371 = vand.u32 %v359, 2147483648
    %v372 = vor.u32 1.1754944e-38, %v371
    %v373 = vsel %vm370, %v372, %v368
    %v374 = vmul.f32 1.0, %v373
    %v375 = vtanh.pop %v314
    %v376 = vxor.u32 %v336, 2147483648
    %v377 = vmul.f32 %v376, 1.442695
    %v378 = vpow.pop %v377
    %v379 = vadd.f32 %v378, 1.0
    %v380 = vrcp.pop %v379
    %v381 = vmul.f32 %v379, %v380
    %v382 = vsub.f32 1.0, %v381
    %v383 = vmul.f32 %v380, %v382
    %v384 = vadd.f32 %v380, %v383
    %vm385 = vweird.f32 %v379
    %vm386 = vweird.f32 %v380
    %vm387 = vmor %vm385, %vm386
    %v388 = vsel %vm387, %v380, %v384
    %v389 = vand.u32 2147483647, %v379
    %vm390 = vcmp.eq.f32.partialorder %v389, 8.507059e+37
    %v391 = vand.u32 %v379, 2147483648
    %v392 = vor.u32 1.1754944e-38, %v391
    %v393 = vsel %vm390, %v392, %v388
    %v394 = vmul.f32 1.0, %v393
    %v395 = vmul.f32 %v374, %v244
    %v396 = vmul.f32 %v355, %v375
    %v397 = vadd.f32 %v395, %v396
    %v398 = vtanh.pop %v397
    %v399 = vmul.f32 %v394, %v398
    %400 = vst.msk [vmem:[#allocation3] sm:$0x3] %vm67, %v399
    %s401 = scalar_lea.vmem [#allocation2], 2
    %v402 = vld [vmem:[%s401] sm:$0x3]
    %v404 = vsel %vm246, %v399, 0
    %406 = vmatpush.msra.mxu0 0.0
    %407 = vmatpush.msra.mxu0 0.0
    %408 = vmatpush.msra.mxu0 0.0
    %409 = vmatpush.msra.mxu0 0.0
    %410 = vmatpush.msra.mxu0 0.0
    %411 = vmatpush.msra.mxu0 0.0
    %412 = vmatpush.msra.mxu0 0.0
    %413 = vmatpush.msra.mxu0 0.0
    %414 = vmatpush.msra.mxu0 0.0
    %415 = vmatpush.msra.mxu0 0.0
    %416 = vmatpush.msra.mxu0 0.0
    %417 = vmatpush.msra.mxu0 0.0
    %418 = vmatpush.msra.mxu0 %v229
    %419 = vmatpush.msra.mxu0 %v228
    %420 = vmatpush.msra.mxu0 %v227
    %421 = vmatpush.msra.mxu0 %v226
    %422 = vmatmul.f32.gmra.mxu0 %v404
    %v423 = vpop.f32.mrf.mxu0
    %v424 = vadd.f32 0.0, %v423
    %425 = vdwg.mxu0
    %v426 = vadd.f32 %v402, %v424
    %s427 = scalar_lea.vmem [#allocation2], 18
    %v428 = vld [vmem:[%s427] sm:$0x3]
    %429 = vmatpush.msra.mxu0 0.0
    %430 = vmatpush.msra.mxu0 0.0
    %431 = vmatpush.msra.mxu0 0.0
    %432 = vmatpush.msra.mxu0 0.0
    %433 = vmatpush.msra.mxu0 0.0
    %434 = vmatpush.msra.mxu0 0.0
    %435 = vmatpush.msra.mxu0 0.0
    %436 = vmatpush.msra.mxu0 0.0
    %437 = vmatpush.msra.mxu0 0.0
    %438 = vmatpush.msra.mxu0 0.0
    %439 = vmatpush.msra.mxu0 0.0
    %440 = vmatpush.msra.mxu0 0.0
    %441 = vmatpush.msra.mxu0 %v233
    %442 = vmatpush.msra.mxu0 %v232
    %443 = vmatpush.msra.mxu0 %v231
    %444 = vmatpush.msra.mxu0 %v230
    %445 = vmatmul.f32.gmra.mxu0 %v404
    %v446 = vpop.f32.mrf.mxu0
    %v447 = vadd.f32 0.0, %v446
    %448 = vdwg.mxu0
    %v449 = vadd.f32 %v428, %v447
    %s450 = scalar_lea.vmem [#allocation2], 34
    %v451 = vld [vmem:[%s450] sm:$0x3]
    %452 = vmatpush.msra.mxu0 0.0
    %453 = vmatpush.msra.mxu0 0.0
    %454 = vmatpush.msra.mxu0 0.0
    %455 = vmatpush.msra.mxu0 0.0
    %456 = vmatpush.msra.mxu0 0.0
    %457 = vmatpush.msra.mxu0 0.0
    %458 = vmatpush.msra.mxu0 0.0
    %459 = vmatpush.msra.mxu0 0.0
    %460 = vmatpush.msra.mxu0 0.0
    %461 = vmatpush.msra.mxu0 0.0
    %462 = vmatpush.msra.mxu0 0.0
    %463 = vmatpush.msra.mxu0 0.0
    %464 = vmatpush.msra.mxu0 %v237
    %465 = vmatpush.msra.mxu0 %v236
    %466 = vmatpush.msra.mxu0 %v235
    %467 = vmatpush.msra.mxu0 %v234
    %468 = vmatmul.f32.gmra.mxu0 %v404
    %v469 = vpop.f32.mrf.mxu0
    %v470 = vadd.f32 0.0, %v469
    %471 = vdwg.mxu0
    %v472 = vadd.f32 %v451, %v470
    %s473 = scalar_lea.vmem [#allocation2], 50
    %v474 = vld [vmem:[%s473] sm:$0x3]
    %475 = vmatpush.msra.mxu0 0.0
    %476 = vmatpush.msra.mxu0 0.0
    %477 = vmatpush.msra.mxu0 0.0
    %478 = vmatpush.msra.mxu0 0.0
    %479 = vmatpush.msra.mxu0 0.0
    %480 = vmatpush.msra.mxu0 0.0
    %481 = vmatpush.msra.mxu0 0.0
    %482 = vmatpush.msra.mxu0 0.0
    %483 = vmatpush.msra.mxu0 0.0
    %484 = vmatpush.msra.mxu0 0.0
    %485 = vmatpush.msra.mxu0 0.0
    %486 = vmatpush.msra.mxu0 0.0
    %487 = vmatpush.msra.mxu0 %v241
    %488 = vmatpush.msra.mxu0 %v240
    %489 = vmatpush.msra.mxu0 %v239
    %490 = vmatpush.msra.mxu0 %v238
    %491 = vmatmul.f32.gmra.mxu0 %v404
    %v492 = vpop.f32.mrf.mxu0
    %v493 = vadd.f32 0.0, %v492
    %494 = vdwg.mxu0
    %v495 = vadd.f32 %v474, %v493
    %v496 = vxor.u32 %v426, 2147483648
    %v497 = vmul.f32 %v496, 1.442695
    %v498 = vpow.pop %v497
    %v499 = vadd.f32 %v498, 1.0
    %v500 = vrcp.pop %v499
    %v501 = vmul.f32 %v499, %v500
    %v502 = vsub.f32 1.0, %v501
    %v503 = vmul.f32 %v500, %v502
    %v504 = vadd.f32 %v500, %v503
    %vm505 = vweird.f32 %v499
    %vm506 = vweird.f32 %v500
    %vm507 = vmor %vm505, %vm506
    %v508 = vsel %vm507, %v500, %v504
    %v509 = vand.u32 2147483647, %v499
    %vm510 = vcmp.eq.f32.partialorder %v509, 8.507059e+37
    %v511 = vand.u32 %v499, 2147483648
    %v512 = vor.u32 1.1754944e-38, %v511
    %v513 = vsel %vm510, %v512, %v508
    %v514 = vmul.f32 1.0, %v513
    %v515 = vxor.u32 %v449, 2147483648
    %v516 = vmul.f32 %v515, 1.442695
    %v517 = vpow.pop %v516
    %v518 = vadd.f32 %v517, 1.0
    %v519 = vrcp.pop %v518
    %v520 = vmul.f32 %v518, %v519
    %v521 = vsub.f32 1.0, %v520
    %v522 = vmul.f32 %v519, %v521
    %v523 = vadd.f32 %v519, %v522
    %vm524 = vweird.f32 %v518
    %vm525 = vweird.f32 %v519
    %vm526 = vmor %vm524, %vm525
    %v527 = vsel %vm526, %v519, %v523
    %v528 = vand.u32 2147483647, %v518
    %vm529 = vcmp.eq.f32.partialorder %v528, 8.507059e+37
    %v530 = vand.u32 %v518, 2147483648
    %v531 = vor.u32 1.1754944e-38, %v530
    %v532 = vsel %vm529, %v531, %v527
    %v533 = vmul.f32 1.0, %v532
    %v534 = vtanh.pop %v472
    %v535 = vxor.u32 %v495, 2147483648
    %v536 = vmul.f32 %v535, 1.442695
    %v537 = vpow.pop %v536
    %v538 = vadd.f32 %v537, 1.0
    %v539 = vrcp.pop %v538
    %v540 = vmul.f32 %v538, %v539
    %v541 = vsub.f32 1.0, %v540
    %v542 = vmul.f32 %v539, %v541
    %v543 = vadd.f32 %v539, %v542
    %vm544 = vweird.f32 %v538
    %vm545 = vweird.f32 %v539
    %vm546 = vmor %vm544, %vm545
    %v547 = vsel %vm546, %v539, %v543
    %v548 = vand.u32 2147483647, %v538
    %vm549 = vcmp.eq.f32.partialorder %v548, 8.507059e+37
    %v550 = vand.u32 %v538, 2147483648
    %v551 = vor.u32 1.1754944e-38, %v550
    %v552 = vsel %vm549, %v551, %v547
    %v553 = vmul.f32 1.0, %v552
    %v554 = vmul.f32 %v533, %v397
    %v555 = vmul.f32 %v514, %v534
    %v556 = vadd.f32 %v554, %v555
    %v557 = vtanh.pop %v556
    %v558 = vmul.f32 %v553, %v557
    %s559 = scalar_lea.vmem [#allocation3], 2
    %560 = vst.msk [vmem:[%s559] sm:$0x3] %vm67, %v558
    %s561 = scalar_lea.vmem [#allocation2], 4
    %v562 = vld [vmem:[%s561] sm:$0x3]
    %v564 = vsel %vm246, %v558, 0
    %566 = vmatpush.msra.mxu0 0.0
    %567 = vmatpush.msra.mxu0 0.0
    %568 = vmatpush.msra.mxu0 0.0
    %569 = vmatpush.msra.mxu0 0.0
    %570 = vmatpush.msra.mxu0 0.0
    %571 = vmatpush.msra.mxu0 0.0
    %572 = vmatpush.msra.mxu0 0.0
    %573 = vmatpush.msra.mxu0 0.0
    %574 = vmatpush.msra.mxu0 0.0
    %575 = vmatpush.msra.mxu0 0.0
    %576 = vmatpush.msra.mxu0 0.0
    %577 = vmatpush.msra.mxu0 0.0
    %578 = vmatpush.msra.mxu0 %v229
    %579 = vmatpush.msra.mxu0 %v228
    %580 = vmatpush.msra.mxu0 %v227
    %581 = vmatpush.msra.mxu0 %v226
    %582 = vmatmul.f32.gmra.mxu0 %v564
    %v583 = vpop.f32.mrf.mxu0
    %v584 = vadd.f32 0.0, %v583
    %585 = vdwg.mxu0
    %v586 = vadd.f32 %v562, %v584
    %s587 = scalar_lea.vmem [#allocation2], 20
    %v588 = vld [vmem:[%s587] sm:$0x3]
    %589 = vmatpush.msra.mxu0 0.0
    %590 = vmatpush.msra.mxu0 0.0
    %591 = vmatpush.msra.mxu0 0.0
    %592 = vmatpush.msra.mxu0 0.0
    %593 = vmatpush.msra.mxu0 0.0
    %594 = vmatpush.msra.mxu0 0.0
    %595 = vmatpush.msra.mxu0 0.0
    %596 = vmatpush.msra.mxu0 0.0
    %597 = vmatpush.msra.mxu0 0.0
    %598 = vmatpush.msra.mxu0 0.0
    %599 = vmatpush.msra.mxu0 0.0
    %600 = vmatpush.msra.mxu0 0.0
    %601 = vmatpush.msra.mxu0 %v233
    %602 = vmatpush.msra.mxu0 %v232
    %603 = vmatpush.msra.mxu0 %v231
    %604 = vmatpush.msra.mxu0 %v230
    %605 = vmatmul.f32.gmra.mxu0 %v564
    %v606 = vpop.f32.mrf.mxu0
    %v607 = vadd.f32 0.0, %v606
    %608 = vdwg.mxu0
    %v609 = vadd.f32 %v588, %v607
    %s610 = scalar_lea.vmem [#allocation2], 36
    %v611 = vld [vmem:[%s610] sm:$0x3]
    %612 = vmatpush.msra.mxu0 0.0
    %613 = vmatpush.msra.mxu0 0.0
    %614 = vmatpush.msra.mxu0 0.0
    %615 = vmatpush.msra.mxu0 0.0
    %616 = vmatpush.msra.mxu0 0.0
    %617 = vmatpush.msra.mxu0 0.0
    %618 = vmatpush.msra.mxu0 0.0
    %619 = vmatpush.msra.mxu0 0.0
    %620 = vmatpush.msra.mxu0 0.0
    %621 = vmatpush.msra.mxu0 0.0
    %622 = vmatpush.msra.mxu0 0.0
    %623 = vmatpush.msra.mxu0 0.0
    %624 = vmatpush.msra.mxu0 %v237
    %625 = vmatpush.msra.mxu0 %v236
    %626 = vmatpush.msra.mxu0 %v235
    %627 = vmatpush.msra.mxu0 %v234
    %628 = vmatmul.f32.gmra.mxu0 %v564
    %v629 = vpop.f32.mrf.mxu0
    %v630 = vadd.f32 0.0, %v629
    %631 = vdwg.mxu0
    %v632 = vadd.f32 %v611, %v630
    %s633 = scalar_lea.vmem [#allocation2], 52
    %v634 = vld [vmem:[%s633] sm:$0x3]
    %635 = vmatpush.msra.mxu0 0.0
    %636 = vmatpush.msra.mxu0 0.0
    %637 = vmatpush.msra.mxu0 0.0
    %638 = vmatpush.msra.mxu0 0.0
    %639 = vmatpush.msra.mxu0 0.0
    %640 = vmatpush.msra.mxu0 0.0
    %641 = vmatpush.msra.mxu0 0.0
    %642 = vmatpush.msra.mxu0 0.0
    %643 = vmatpush.msra.mxu0 0.0
    %644 = vmatpush.msra.mxu0 0.0
    %645 = vmatpush.msra.mxu0 0.0
    %646 = vmatpush.msra.mxu0 0.0
    %647 = vmatpush.msra.mxu0 %v241
    %648 = vmatpush.msra.mxu0 %v240
    %649 = vmatpush.msra.mxu0 %v239
    %650 = vmatpush.msra.mxu0 %v238
    %651 = vmatmul.f32.gmra.mxu0 %v564
    %v652 = vpop.f32.mrf.mxu0
    %v653 = vadd.f32 0.0, %v652
    %654 = vdwg.mxu0
    %v655 = vadd.f32 %v634, %v653
    %v656 = vxor.u32 %v586, 2147483648
    %v657 = vmul.f32 %v656, 1.442695
    %v658 = vpow.pop %v657
    %v659 = vadd.f32 %v658, 1.0
    %v660 = vrcp.pop %v659
    %v661 = vmul.f32 %v659, %v660
    %v662 = vsub.f32 1.0, %v661
    %v663 = vmul.f32 %v660, %v662
    %v664 = vadd.f32 %v660, %v663
    %vm665 = vweird.f32 %v659
    %vm666 = vweird.f32 %v660
    %vm667 = vmor %vm665, %vm666
    %v668 = vsel %vm667, %v660, %v664
    %v669 = vand.u32 2147483647, %v659
    %vm670 = vcmp.eq.f32.partialorder %v669, 8.507059e+37
    %v671 = vand.u32 %v659, 2147483648
    %v672 = vor.u32 1.1754944e-38, %v671
    %v673 = vsel %vm670, %v672, %v668
    %v674 = vmul.f32 1.0, %v673
    %v675 = vxor.u32 %v609, 2147483648
    %v676 = vmul.f32 %v675, 1.442695
    %v677 = vpow.pop %v676
    %v678 = vadd.f32 %v677, 1.0
    %v679 = vrcp.pop %v678
    %v680 = vmul.f32 %v678, %v679
    %v681 = vsub.f32 1.0, %v680
    %v682 = vmul.f32 %v679, %v681
    %v683 = vadd.f32 %v679, %v682
    %vm684 = vweird.f32 %v678
    %vm685 = vweird.f32 %v679
    %vm686 = vmor %vm684, %vm685
    %v687 = vsel %vm686, %v679, %v683
    %v688 = vand.u32 2147483647, %v678
    %vm689 = vcmp.eq.f32.partialorder %v688, 8.507059e+37
    %v690 = vand.u32 %v678, 2147483648
    %v691 = vor.u32 1.1754944e-38, %v690
    %v692 = vsel %vm689, %v691, %v687
    %v693 = vmul.f32 1.0, %v692
    %v694 = vtanh.pop %v632
    %v695 = vxor.u32 %v655, 2147483648
    %v696 = vmul.f32 %v695, 1.442695
    %v697 = vpow.pop %v696
    %v698 = vadd.f32 %v697, 1.0
    %v699 = vrcp.pop %v698
    %v700 = vmul.f32 %v698, %v699
    %v701 = vsub.f32 1.0, %v700
    %v702 = vmul.f32 %v699, %v701
    %v703 = vadd.f32 %v699, %v702
    %vm704 = vweird.f32 %v698
    %vm705 = vweird.f32 %v699
    %vm706 = vmor %vm704, %vm705
    %v707 = vsel %vm706, %v699, %v703
    %v708 = vand.u32 2147483647, %v698
    %vm709 = vcmp.eq.f32.partialorder %v708, 8.507059e+37
    %v710 = vand.u32 %v698, 2147483648
    %v711 = vor.u32 1.1754944e-38, %v710
    %v712 = vsel %vm709, %v711, %v707
    %v713 = vmul.f32 1.0, %v712
    %v714 = vmul.f32 %v693, %v556
    %v715 = vmul.f32 %v674, %v694
    %v716 = vadd.f32 %v714, %v715
    %v717 = vtanh.pop %v716
    %v718 = vmul.f32 %v713, %v717
    %s719 = scalar_lea.vmem [#allocation3], 4
    %720 = vst.msk [vmem:[%s719] sm:$0x3] %vm67, %v718
    %s721 = scalar_lea.vmem [#allocation2], 6
    %v722 = vld [vmem:[%s721] sm:$0x3]
    %v724 = vsel %vm246, %v718, 0
    %726 = vmatpush.msra.mxu0 0.0
    %727 = vmatpush.msra.mxu0 0.0
    %728 = vmatpush.msra.mxu0 0.0
    %729 = vmatpush.msra.mxu0 0.0
    %730 = vmatpush.msra.mxu0 0.0
    %731 = vmatpush.msra.mxu0 0.0
    %732 = vmatpush.msra.mxu0 0.0
    %733 = vmatpush.msra.mxu0 0.0
    %734 = vmatpush.msra.mxu0 0.0
    %735 = vmatpush.msra.mxu0 0.0
    %736 = vmatpush.msra.mxu0 0.0
    %737 = vmatpush.msra.mxu0 0.0
    %738 = vmatpush.msra.mxu0 %v229
    %739 = vmatpush.msra.mxu0 %v228
    %740 = vmatpush.msra.mxu0 %v227
    %741 = vmatpush.msra.mxu0 %v226
    %742 = vmatmul.f32.gmra.mxu0 %v724
    %v743 = vpop.f32.mrf.mxu0
    %v744 = vadd.f32 0.0, %v743
    %745 = vdwg.mxu0
    %v746 = vadd.f32 %v722, %v744
    %s747 = scalar_lea.vmem [#allocation2], 22
    %v748 = vld [vmem:[%s747] sm:$0x3]
    %749 = vmatpush.msra.mxu0 0.0
    %750 = vmatpush.msra.mxu0 0.0
    %751 = vmatpush.msra.mxu0 0.0
    %752 = vmatpush.msra.mxu0 0.0
    %753 = vmatpush.msra.mxu0 0.0
    %754 = vmatpush.msra.mxu0 0.0
    %755 = vmatpush.msra.mxu0 0.0
    %756 = vmatpush.msra.mxu0 0.0
    %757 = vmatpush.msra.mxu0 0.0
    %758 = vmatpush.msra.mxu0 0.0
    %759 = vmatpush.msra.mxu0 0.0
    %760 = vmatpush.msra.mxu0 0.0
    %761 = vmatpush.msra.mxu0 %v233
    %762 = vmatpush.msra.mxu0 %v232
    %763 = vmatpush.msra.mxu0 %v231
    %764 = vmatpush.msra.mxu0 %v230
    %765 = vmatmul.f32.gmra.mxu0 %v724
    %v766 = vpop.f32.mrf.mxu0
    %v767 = vadd.f32 0.0, %v766
    %768 = vdwg.mxu0
    %v769 = vadd.f32 %v748, %v767
    %s770 = scalar_lea.vmem [#allocation2], 38
    %v771 = vld [vmem:[%s770] sm:$0x3]
    %772 = vmatpush.msra.mxu0 0.0
    %773 = vmatpush.msra.mxu0 0.0
    %774 = vmatpush.msra.mxu0 0.0
    %775 = vmatpush.msra.mxu0 0.0
    %776 = vmatpush.msra.mxu0 0.0
    %777 = vmatpush.msra.mxu0 0.0
    %778 = vmatpush.msra.mxu0 0.0
    %779 = vmatpush.msra.mxu0 0.0
    %780 = vmatpush.msra.mxu0 0.0
    %781 = vmatpush.msra.mxu0 0.0
    %782 = vmatpush.msra.mxu0 0.0
    %783 = vmatpush.msra.mxu0 0.0
    %784 = vmatpush.msra.mxu0 %v237
    %785 = vmatpush.msra.mxu0 %v236
    %786 = vmatpush.msra.mxu0 %v235
    %787 = vmatpush.msra.mxu0 %v234
    %788 = vmatmul.f32.gmra.mxu0 %v724
    %v789 = vpop.f32.mrf.mxu0
    %v790 = vadd.f32 0.0, %v789
    %791 = vdwg.mxu0
    %v792 = vadd.f32 %v771, %v790
    %s793 = scalar_lea.vmem [#allocation2], 54
    %v794 = vld [vmem:[%s793] sm:$0x3]
    %795 = vmatpush.msra.mxu0 0.0
    %796 = vmatpush.msra.mxu0 0.0
    %797 = vmatpush.msra.mxu0 0.0
    %798 = vmatpush.msra.mxu0 0.0
    %799 = vmatpush.msra.mxu0 0.0
    %800 = vmatpush.msra.mxu0 0.0
    %801 = vmatpush.msra.mxu0 0.0
    %802 = vmatpush.msra.mxu0 0.0
    %803 = vmatpush.msra.mxu0 0.0
    %804 = vmatpush.msra.mxu0 0.0
    %805 = vmatpush.msra.mxu0 0.0
    %806 = vmatpush.msra.mxu0 0.0
    %807 = vmatpush.msra.mxu0 %v241
    %808 = vmatpush.msra.mxu0 %v240
    %809 = vmatpush.msra.mxu0 %v239
    %810 = vmatpush.msra.mxu0 %v238
    %811 = vmatmul.f32.gmra.mxu0 %v724
    %v812 = vpop.f32.mrf.mxu0
    %v813 = vadd.f32 0.0, %v812
    %814 = vdwg.mxu0
    %v815 = vadd.f32 %v794, %v813
    %v816 = vxor.u32 %v746, 2147483648
    %v817 = vmul.f32 %v816, 1.442695
    %v818 = vpow.pop %v817
    %v819 = vadd.f32 %v818, 1.0
    %v820 = vrcp.pop %v819
    %v821 = vmul.f32 %v819, %v820
    %v822 = vsub.f32 1.0, %v821
    %v823 = vmul.f32 %v820, %v822
    %v824 = vadd.f32 %v820, %v823
    %vm825 = vweird.f32 %v819
    %vm826 = vweird.f32 %v820
    %vm827 = vmor %vm825, %vm826
    %v828 = vsel %vm827, %v820, %v824
    %v829 = vand.u32 2147483647, %v819
    %vm830 = vcmp.eq.f32.partialorder %v829, 8.507059e+37
    %v831 = vand.u32 %v819, 2147483648
    %v832 = vor.u32 1.1754944e-38, %v831
    %v833 = vsel %vm830, %v832, %v828
    %v834 = vmul.f32 1.0, %v833
    %v835 = vxor.u32 %v769, 2147483648
    %v836 = vmul.f32 %v835, 1.442695
    %v837 = vpow.pop %v836
    %v838 = vadd.f32 %v837, 1.0
    %v839 = vrcp.pop %v838
    %v840 = vmul.f32 %v838, %v839
    %v841 = vsub.f32 1.0, %v840
    %v842 = vmul.f32 %v839, %v841
    %v843 = vadd.f32 %v839, %v842
    %vm844 = vweird.f32 %v838
    %vm845 = vweird.f32 %v839
    %vm846 = vmor %vm844, %vm845
    %v847 = vsel %vm846, %v839, %v843
    %v848 = vand.u32 2147483647, %v838
    %vm849 = vcmp.eq.f32.partialorder %v848, 8.507059e+37
    %v850 = vand.u32 %v838, 2147483648
    %v851 = vor.u32 1.1754944e-38, %v850
    %v852 = vsel %vm849, %v851, %v847
    %v853 = vmul.f32 1.0, %v852
    %v854 = vtanh.pop %v792
    %v855 = vxor.u32 %v815, 2147483648
    %v856 = vmul.f32 %v855, 1.442695
    %v857 = vpow.pop %v856
    %v858 = vadd.f32 %v857, 1.0
    %v859 = vrcp.pop %v858
    %v860 = vmul.f32 %v858, %v859
    %v861 = vsub.f32 1.0, %v860
    %v862 = vmul.f32 %v859, %v861
    %v863 = vadd.f32 %v859, %v862
    %vm864 = vweird.f32 %v858
    %vm865 = vweird.f32 %v859
    %vm866 = vmor %vm864, %vm865
    %v867 = vsel %vm866, %v859, %v863
    %v868 = vand.u32 2147483647, %v858
    %vm869 = vcmp.eq.f32.partialorder %v868, 8.507059e+37
    %v870 = vand.u32 %v858, 2147483648
    %v871 = vor.u32 1.1754944e-38, %v870
    %v872 = vsel %vm869, %v871, %v867
    %v873 = vmul.f32 1.0, %v872
    %v874 = vmul.f32 %v853, %v716
    %v875 = vmul.f32 %v834, %v854
    %v876 = vadd.f32 %v874, %v875
    %v877 = vtanh.pop %v876
    %v878 = vmul.f32 %v873, %v877
    %s879 = scalar_lea.vmem [#allocation3], 6
    %880 = vst.msk [vmem:[%s879] sm:$0x3] %vm67, %v878
    %s881 = scalar_lea.vmem [#allocation2], 8
    %v882 = vld [vmem:[%s881] sm:$0x3]
    %v884 = vsel %vm246, %v878, 0
    %886 = vmatpush.msra.mxu0 0.0
    %887 = vmatpush.msra.mxu0 0.0
    %888 = vmatpush.msra.mxu0 0.0
    %889 = vmatpush.msra.mxu0 0.0
    %890 = vmatpush.msra.mxu0 0.0
    %891 = vmatpush.msra.mxu0 0.0
    %892 = vmatpush.msra.mxu0 0.0
    %893 = vmatpush.msra.mxu0 0.0
    %894 = vmatpush.msra.mxu0 0.0
    %895 = vmatpush.msra.mxu0 0.0
    %896 = vmatpush.msra.mxu0 0.0
    %897 = vmatpush.msra.mxu0 0.0
    %898 = vmatpush.msra.mxu0 %v229
    %899 = vmatpush.msra.mxu0 %v228
    %900 = vmatpush.msra.mxu0 %v227
    %901 = vmatpush.msra.mxu0 %v226
    %902 = vmatmul.f32.gmra.mxu0 %v884
    %v903 = vpop.f32.mrf.mxu0
    %v904 = vadd.f32 0.0, %v903
    %905 = vdwg.mxu0
    %v906 = vadd.f32 %v882, %v904
    %s907 = scalar_lea.vmem [#allocation2], 24
    %v908 = vld [vmem:[%s907] sm:$0x3]
    %909 = vmatpush.msra.mxu0 0.0
    %910 = vmatpush.msra.mxu0 0.0
    %911 = vmatpush.msra.mxu0 0.0
    %912 = vmatpush.msra.mxu0 0.0
    %913 = vmatpush.msra.mxu0 0.0
    %914 = vmatpush.msra.mxu0 0.0
    %915 = vmatpush.msra.mxu0 0.0
    %916 = vmatpush.msra.mxu0 0.0
    %917 = vmatpush.msra.mxu0 0.0
    %918 = vmatpush.msra.mxu0 0.0
    %919 = vmatpush.msra.mxu0 0.0
    %920 = vmatpush.msra.mxu0 0.0
    %921 = vmatpush.msra.mxu0 %v233
    %922 = vmatpush.msra.mxu0 %v232
    %923 = vmatpush.msra.mxu0 %v231
    %924 = vmatpush.msra.mxu0 %v230
    %925 = vmatmul.f32.gmra.mxu0 %v884
    %v926 = vpop.f32.mrf.mxu0
    %v927 = vadd.f32 0.0, %v926
    %928 = vdwg.mxu0
    %v929 = vadd.f32 %v908, %v927
    %s930 = scalar_lea.vmem [#allocation2], 40
    %v931 = vld [vmem:[%s930] sm:$0x3]
    %932 = vmatpush.msra.mxu0 0.0
    %933 = vmatpush.msra.mxu0 0.0
    %934 = vmatpush.msra.mxu0 0.0
    %935 = vmatpush.msra.mxu0 0.0
    %936 = vmatpush.msra.mxu0 0.0
    %937 = vmatpush.msra.mxu0 0.0
    %938 = vmatpush.msra.mxu0 0.0
    %939 = vmatpush.msra.mxu0 0.0
    %940 = vmatpush.msra.mxu0 0.0
    %941 = vmatpush.msra.mxu0 0.0
    %942 = vmatpush.msra.mxu0 0.0
    %943 = vmatpush.msra.mxu0 0.0
    %944 = vmatpush.msra.mxu0 %v237
    %945 = vmatpush.msra.mxu0 %v236
    %946 = vmatpush.msra.mxu0 %v235
    %947 = vmatpush.msra.mxu0 %v234
    %948 = vmatmul.f32.gmra.mxu0 %v884
    %v949 = vpop.f32.mrf.mxu0
    %v950 = vadd.f32 0.0, %v949
    %951 = vdwg.mxu0
    %v952 = vadd.f32 %v931, %v950
    %s953 = scalar_lea.vmem [#allocation2], 56
    %v954 = vld [vmem:[%s953] sm:$0x3]
    %955 = vmatpush.msra.mxu0 0.0
    %956 = vmatpush.msra.mxu0 0.0
    %957 = vmatpush.msra.mxu0 0.0
    %958 = vmatpush.msra.mxu0 0.0
    %959 = vmatpush.msra.mxu0 0.0
    %960 = vmatpush.msra.mxu0 0.0
    %961 = vmatpush.msra.mxu0 0.0
    %962 = vmatpush.msra.mxu0 0.0
    %963 = vmatpush.msra.mxu0 0.0
    %964 = vmatpush.msra.mxu0 0.0
    %965 = vmatpush.msra.mxu0 0.0
    %966 = vmatpush.msra.mxu0 0.0
    %967 = vmatpush.msra.mxu0 %v241
    %968 = vmatpush.msra.mxu0 %v240
    %969 = vmatpush.msra.mxu0 %v239
    %970 = vmatpush.msra.mxu0 %v238
    %971 = vmatmul.f32.gmra.mxu0 %v884
    %v972 = vpop.f32.mrf.mxu0
    %v973 = vadd.f32 0.0, %v972
    %974 = vdwg.mxu0
    %v975 = vadd.f32 %v954, %v973
    %v976 = vxor.u32 %v906, 2147483648
    %v977 = vmul.f32 %v976, 1.442695
    %v978 = vpow.pop %v977
    %v979 = vadd.f32 %v978, 1.0
    %v980 = vrcp.pop %v979
    %v981 = vmul.f32 %v979, %v980
    %v982 = vsub.f32 1.0, %v981
    %v983 = vmul.f32 %v980, %v982
    %v984 = vadd.f32 %v980, %v983
    %vm985 = vweird.f32 %v979
    %vm986 = vweird.f32 %v980
    %vm987 = vmor %vm985, %vm986
    %v988 = vsel %vm987, %v980, %v984
    %v989 = vand.u32 2147483647, %v979
    %vm990 = vcmp.eq.f32.partialorder %v989, 8.507059e+37
    %v991 = vand.u32 %v979, 2147483648
    %v992 = vor.u32 1.1754944e-38, %v991
    %v993 = vsel %vm990, %v992, %v988
    %v994 = vmul.f32 1.0, %v993
    %v995 = vxor.u32 %v929, 2147483648
    %v996 = vmul.f32 %v995, 1.442695
    %v997 = vpow.pop %v996
    %v998 = vadd.f32 %v997, 1.0
    %v999 = vrcp.pop %v998
    %v1000 = vmul.f32 %v998, %v999
    %v1001 = vsub.f32 1.0, %v1000
    %v1002 = vmul.f32 %v999, %v1001
    %v1003 = vadd.f32 %v999, %v1002
    %vm1004 = vweird.f32 %v998
    %vm1005 = vweird.f32 %v999
    %vm1006 = vmor %vm1004, %vm1005
    %v1007 = vsel %vm1006, %v999, %v1003
    %v1008 = vand.u32 2147483647, %v998
    %vm1009 = vcmp.eq.f32.partialorder %v1008, 8.507059e+37
    %v1010 = vand.u32 %v998, 2147483648
    %v1011 = vor.u32 1.1754944e-38, %v1010
    %v1012 = vsel %vm1009, %v1011, %v1007
    %v1013 = vmul.f32 1.0, %v1012
    %v1014 = vtanh.pop %v952
    %v1015 = vxor.u32 %v975, 2147483648
    %v1016 = vmul.f32 %v1015, 1.442695
    %v1017 = vpow.pop %v1016
    %v1018 = vadd.f32 %v1017, 1.0
    %v1019 = vrcp.pop %v1018
    %v1020 = vmul.f32 %v1018, %v1019
    %v1021 = vsub.f32 1.0, %v1020
    %v1022 = vmul.f32 %v1019, %v1021
    %v1023 = vadd.f32 %v1019, %v1022
    %vm1024 = vweird.f32 %v1018
    %vm1025 = vweird.f32 %v1019
    %vm1026 = vmor %vm1024, %vm1025
    %v1027 = vsel %vm1026, %v1019, %v1023
    %v1028 = vand.u32 2147483647, %v1018
    %vm1029 = vcmp.eq.f32.partialorder %v1028, 8.507059e+37
    %v1030 = vand.u32 %v1018, 2147483648
    %v1031 = vor.u32 1.1754944e-38, %v1030
    %v1032 = vsel %vm1029, %v1031, %v1027
    %v1033 = vmul.f32 1.0, %v1032
    %v1034 = vmul.f32 %v1013, %v876
    %v1035 = vmul.f32 %v994, %v1014
    %v1036 = vadd.f32 %v1034, %v1035
    %v1037 = vtanh.pop %v1036
    %v1038 = vmul.f32 %v1033, %v1037
    %s1039 = scalar_lea.vmem [#allocation3], 8
    %1040 = vst.msk [vmem:[%s1039] sm:$0x3] %vm67, %v1038
    %s1041 = scalar_lea.vmem [#allocation2], 10
    %v1042 = vld [vmem:[%s1041] sm:$0x3]
    %v1044 = vsel %vm246, %v1038, 0
    %1046 = vmatpush.msra.mxu0 0.0
    %1047 = vmatpush.msra.mxu0 0.0
    %1048 = vmatpush.msra.mxu0 0.0
    %1049 = vmatpush.msra.mxu0 0.0
    %1050 = vmatpush.msra.mxu0 0.0
    %1051 = vmatpush.msra.mxu0 0.0
    %1052 = vmatpush.msra.mxu0 0.0
    %1053 = vmatpush.msra.mxu0 0.0
    %1054 = vmatpush.msra.mxu0 0.0
    %1055 = vmatpush.msra.mxu0 0.0
    %1056 = vmatpush.msra.mxu0 0.0
    %1057 = vmatpush.msra.mxu0 0.0
    %1058 = vmatpush.msra.mxu0 %v229
    %1059 = vmatpush.msra.mxu0 %v228
    %1060 = vmatpush.msra.mxu0 %v227
    %1061 = vmatpush.msra.mxu0 %v226
    %1062 = vmatmul.f32.gmra.mxu0 %v1044
    %v1063 = vpop.f32.mrf.mxu0
    %v1064 = vadd.f32 0.0, %v1063
    %1065 = vdwg.mxu0
    %v1066 = vadd.f32 %v1042, %v1064
    %s1067 = scalar_lea.vmem [#allocation2], 26
    %v1068 = vld [vmem:[%s1067] sm:$0x3]
    %1069 = vmatpush.msra.mxu0 0.0
    %1070 = vmatpush.msra.mxu0 0.0
    %1071 = vmatpush.msra.mxu0 0.0
    %1072 = vmatpush.msra.mxu0 0.0
    %1073 = vmatpush.msra.mxu0 0.0
    %1074 = vmatpush.msra.mxu0 0.0
    %1075 = vmatpush.msra.mxu0 0.0
    %1076 = vmatpush.msra.mxu0 0.0
    %1077 = vmatpush.msra.mxu0 0.0
    %1078 = vmatpush.msra.mxu0 0.0
    %1079 = vmatpush.msra.mxu0 0.0
    %1080 = vmatpush.msra.mxu0 0.0
    %1081 = vmatpush.msra.mxu0 %v233
    %1082 = vmatpush.msra.mxu0 %v232
    %1083 = vmatpush.msra.mxu0 %v231
    %1084 = vmatpush.msra.mxu0 %v230
    %1085 = vmatmul.f32.gmra.mxu0 %v1044
    %v1086 = vpop.f32.mrf.mxu0
    %v1087 = vadd.f32 0.0, %v1086
    %1088 = vdwg.mxu0
    %v1089 = vadd.f32 %v1068, %v1087
    %s1090 = scalar_lea.vmem [#allocation2], 42
    %v1091 = vld [vmem:[%s1090] sm:$0x3]
    %1092 = vmatpush.msra.mxu0 0.0
    %1093 = vmatpush.msra.mxu0 0.0
    %1094 = vmatpush.msra.mxu0 0.0
    %1095 = vmatpush.msra.mxu0 0.0
    %1096 = vmatpush.msra.mxu0 0.0
    %1097 = vmatpush.msra.mxu0 0.0
    %1098 = vmatpush.msra.mxu0 0.0
    %1099 = vmatpush.msra.mxu0 0.0
    %1100 = vmatpush.msra.mxu0 0.0
    %1101 = vmatpush.msra.mxu0 0.0
    %1102 = vmatpush.msra.mxu0 0.0
    %1103 = vmatpush.msra.mxu0 0.0
    %1104 = vmatpush.msra.mxu0 %v237
    %1105 = vmatpush.msra.mxu0 %v236
    %1106 = vmatpush.msra.mxu0 %v235
    %1107 = vmatpush.msra.mxu0 %v234
    %1108 = vmatmul.f32.gmra.mxu0 %v1044
    %v1109 = vpop.f32.mrf.mxu0
    %v1110 = vadd.f32 0.0, %v1109
    %1111 = vdwg.mxu0
    %v1112 = vadd.f32 %v1091, %v1110
    %s1113 = scalar_lea.vmem [#allocation2], 58
    %v1114 = vld [vmem:[%s1113] sm:$0x3]
    %1115 = vmatpush.msra.mxu0 0.0
    %1116 = vmatpush.msra.mxu0 0.0
    %1117 = vmatpush.msra.mxu0 0.0
    %1118 = vmatpush.msra.mxu0 0.0
    %1119 = vmatpush.msra.mxu0 0.0
    %1120 = vmatpush.msra.mxu0 0.0
    %1121 = vmatpush.msra.mxu0 0.0
    %1122 = vmatpush.msra.mxu0 0.0
    %1123 = vmatpush.msra.mxu0 0.0
    %1124 = vmatpush.msra.mxu0 0.0
    %1125 = vmatpush.msra.mxu0 0.0
    %1126 = vmatpush.msra.mxu0 0.0
    %1127 = vmatpush.msra.mxu0 %v241
    %1128 = vmatpush.msra.mxu0 %v240
    %1129 = vmatpush.msra.mxu0 %v239
    %1130 = vmatpush.msra.mxu0 %v238
    %1131 = vmatmul.f32.gmra.mxu0 %v1044
    %v1132 = vpop.f32.mrf.mxu0
    %v1133 = vadd.f32 0.0, %v1132
    %1134 = vdwg.mxu0
    %v1135 = vadd.f32 %v1114, %v1133
    %v1136 = vxor.u32 %v1066, 2147483648
    %v1137 = vmul.f32 %v1136, 1.442695
    %v1138 = vpow.pop %v1137
    %v1139 = vadd.f32 %v1138, 1.0
    %v1140 = vrcp.pop %v1139
    %v1141 = vmul.f32 %v1139, %v1140
    %v1142 = vsub.f32 1.0, %v1141
    %v1143 = vmul.f32 %v1140, %v1142
    %v1144 = vadd.f32 %v1140, %v1143
    %vm1145 = vweird.f32 %v1139
    %vm1146 = vweird.f32 %v1140
    %vm1147 = vmor %vm1145, %vm1146
    %v1148 = vsel %vm1147, %v1140, %v1144
    %v1149 = vand.u32 2147483647, %v1139
    %vm1150 = vcmp.eq.f32.partialorder %v1149, 8.507059e+37
    %v1151 = vand.u32 %v1139, 2147483648
    %v1152 = vor.u32 1.1754944e-38, %v1151
    %v1153 = vsel %vm1150, %v1152, %v1148
    %v1154 = vmul.f32 1.0, %v1153
    %v1155 = vxor.u32 %v1089, 2147483648
    %v1156 = vmul.f32 %v1155, 1.442695
    %v1157 = vpow.pop %v1156
    %v1158 = vadd.f32 %v1157, 1.0
    %v1159 = vrcp.pop %v1158
    %v1160 = vmul.f32 %v1158, %v1159
    %v1161 = vsub.f32 1.0, %v1160
    %v1162 = vmul.f32 %v1159, %v1161
    %v1163 = vadd.f32 %v1159, %v1162
    %vm1164 = vweird.f32 %v1158
    %vm1165 = vweird.f32 %v1159
    %vm1166 = vmor %vm1164, %vm1165
    %v1167 = vsel %vm1166, %v1159, %v1163
    %v1168 = vand.u32 2147483647, %v1158
    %vm1169 = vcmp.eq.f32.partialorder %v1168, 8.507059e+37
    %v1170 = vand.u32 %v1158, 2147483648
    %v1171 = vor.u32 1.1754944e-38, %v1170
    %v1172 = vsel %vm1169, %v1171, %v1167
    %v1173 = vmul.f32 1.0, %v1172
    %v1174 = vtanh.pop %v1112
    %v1175 = vxor.u32 %v1135, 2147483648
    %v1176 = vmul.f32 %v1175, 1.442695
    %v1177 = vpow.pop %v1176
    %v1178 = vadd.f32 %v1177, 1.0
    %v1179 = vrcp.pop %v1178
    %v1180 = vmul.f32 %v1178, %v1179
    %v1181 = vsub.f32 1.0, %v1180
    %v1182 = vmul.f32 %v1179, %v1181
    %v1183 = vadd.f32 %v1179, %v1182
    %vm1184 = vweird.f32 %v1178
    %vm1185 = vweird.f32 %v1179
    %vm1186 = vmor %vm1184, %vm1185
    %v1187 = vsel %vm1186, %v1179, %v1183
    %v1188 = vand.u32 2147483647, %v1178
    %vm1189 = vcmp.eq.f32.partialorder %v1188, 8.507059e+37
    %v1190 = vand.u32 %v1178, 2147483648
    %v1191 = vor.u32 1.1754944e-38, %v1190
    %v1192 = vsel %vm1189, %v1191, %v1187
    %v1193 = vmul.f32 1.0, %v1192
    %v1194 = vmul.f32 %v1173, %v1036
    %v1195 = vmul.f32 %v1154, %v1174
    %v1196 = vadd.f32 %v1194, %v1195
    %v1197 = vtanh.pop %v1196
    %v1198 = vmul.f32 %v1193, %v1197
    %s1199 = scalar_lea.vmem [#allocation3], 10
    %1200 = vst.msk [vmem:[%s1199] sm:$0x3] %vm67, %v1198
    %s1201 = scalar_lea.vmem [#allocation2], 12
    %v1202 = vld [vmem:[%s1201] sm:$0x3]
    %v1204 = vsel %vm246, %v1198, 0
    %1206 = vmatpush.msra.mxu0 0.0
    %1207 = vmatpush.msra.mxu0 0.0
    %1208 = vmatpush.msra.mxu0 0.0
    %1209 = vmatpush.msra.mxu0 0.0
    %1210 = vmatpush.msra.mxu0 0.0
    %1211 = vmatpush.msra.mxu0 0.0
    %1212 = vmatpush.msra.mxu0 0.0
    %1213 = vmatpush.msra.mxu0 0.0
    %1214 = vmatpush.msra.mxu0 0.0
    %1215 = vmatpush.msra.mxu0 0.0
    %1216 = vmatpush.msra.mxu0 0.0
    %1217 = vmatpush.msra.mxu0 0.0
    %1218 = vmatpush.msra.mxu0 %v229
    %1219 = vmatpush.msra.mxu0 %v228
    %1220 = vmatpush.msra.mxu0 %v227
    %1221 = vmatpush.msra.mxu0 %v226
    %1222 = vmatmul.f32.gmra.mxu0 %v1204
    %v1223 = vpop.f32.mrf.mxu0
    %v1224 = vadd.f32 0.0, %v1223
    %1225 = vdwg.mxu0
    %v1226 = vadd.f32 %v1202, %v1224
    %s1227 = scalar_lea.vmem [#allocation2], 28
    %v1228 = vld [vmem:[%s1227] sm:$0x3]
    %1229 = vmatpush.msra.mxu0 0.0
    %1230 = vmatpush.msra.mxu0 0.0
    %1231 = vmatpush.msra.mxu0 0.0
    %1232 = vmatpush.msra.mxu0 0.0
    %1233 = vmatpush.msra.mxu0 0.0
    %1234 = vmatpush.msra.mxu0 0.0
    %1235 = vmatpush.msra.mxu0 0.0
    %1236 = vmatpush.msra.mxu0 0.0
    %1237 = vmatpush.msra.mxu0 0.0
    %1238 = vmatpush.msra.mxu0 0.0
    %1239 = vmatpush.msra.mxu0 0.0
    %1240 = vmatpush.msra.mxu0 0.0
    %1241 = vmatpush.msra.mxu0 %v233
    %1242 = vmatpush.msra.mxu0 %v232
    %1243 = vmatpush.msra.mxu0 %v231
    %1244 = vmatpush.msra.mxu0 %v230
    %1245 = vmatmul.f32.gmra.mxu0 %v1204
    %v1246 = vpop.f32.mrf.mxu0
    %v1247 = vadd.f32 0.0, %v1246
    %1248 = vdwg.mxu0
    %v1249 = vadd.f32 %v1228, %v1247
    %s1250 = scalar_lea.vmem [#allocation2], 44
    %v1251 = vld [vmem:[%s1250] sm:$0x3]
    %1252 = vmatpush.msra.mxu0 0.0
    %1253 = vmatpush.msra.mxu0 0.0
    %1254 = vmatpush.msra.mxu0 0.0
    %1255 = vmatpush.msra.mxu0 0.0
    %1256 = vmatpush.msra.mxu0 0.0
    %1257 = vmatpush.msra.mxu0 0.0
    %1258 = vmatpush.msra.mxu0 0.0
    %1259 = vmatpush.msra.mxu0 0.0
    %1260 = vmatpush.msra.mxu0 0.0
    %1261 = vmatpush.msra.mxu0 0.0
    %1262 = vmatpush.msra.mxu0 0.0
    %1263 = vmatpush.msra.mxu0 0.0
    %1264 = vmatpush.msra.mxu0 %v237
    %1265 = vmatpush.msra.mxu0 %v236
    %1266 = vmatpush.msra.mxu0 %v235
    %1267 = vmatpush.msra.mxu0 %v234
    %1268 = vmatmul.f32.gmra.mxu0 %v1204
    %v1269 = vpop.f32.mrf.mxu0
    %v1270 = vadd.f32 0.0, %v1269
    %1271 = vdwg.mxu0
    %v1272 = vadd.f32 %v1251, %v1270
    %s1273 = scalar_lea.vmem [#allocation2], 60
    %v1274 = vld [vmem:[%s1273] sm:$0x3]
    %1275 = vmatpush.msra.mxu0 0.0
    %1276 = vmatpush.msra.mxu0 0.0
    %1277 = vmatpush.msra.mxu0 0.0
    %1278 = vmatpush.msra.mxu0 0.0
    %1279 = vmatpush.msra.mxu0 0.0
    %1280 = vmatpush.msra.mxu0 0.0
    %1281 = vmatpush.msra.mxu0 0.0
    %1282 = vmatpush.msra.mxu0 0.0
    %1283 = vmatpush.msra.mxu0 0.0
    %1284 = vmatpush.msra.mxu0 0.0
    %1285 = vmatpush.msra.mxu0 0.0
    %1286 = vmatpush.msra.mxu0 0.0
    %1287 = vmatpush.msra.mxu0 %v241
    %1288 = vmatpush.msra.mxu0 %v240
    %1289 = vmatpush.msra.mxu0 %v239
    %1290 = vmatpush.msra.mxu0 %v238
    %1291 = vmatmul.f32.gmra.mxu0 %v1204
    %v1292 = vpop.f32.mrf.mxu0
    %v1293 = vadd.f32 0.0, %v1292
    %1294 = vdwg.mxu0
    %v1295 = vadd.f32 %v1274, %v1293
    %v1296 = vxor.u32 %v1226, 2147483648
    %v1297 = vmul.f32 %v1296, 1.442695
    %v1298 = vpow.pop %v1297
    %v1299 = vadd.f32 %v1298, 1.0
    %v1300 = vrcp.pop %v1299
    %v1301 = vmul.f32 %v1299, %v1300
    %v1302 = vsub.f32 1.0, %v1301
    %v1303 = vmul.f32 %v1300, %v1302
    %v1304 = vadd.f32 %v1300, %v1303
    %vm1305 = vweird.f32 %v1299
    %vm1306 = vweird.f32 %v1300
    %vm1307 = vmor %vm1305, %vm1306
    %v1308 = vsel %vm1307, %v1300, %v1304
    %v1309 = vand.u32 2147483647, %v1299
    %vm1310 = vcmp.eq.f32.partialorder %v1309, 8.507059e+37
    %v1311 = vand.u32 %v1299, 2147483648
    %v1312 = vor.u32 1.1754944e-38, %v1311
    %v1313 = vsel %vm1310, %v1312, %v1308
    %v1314 = vmul.f32 1.0, %v1313
    %v1315 = vxor.u32 %v1249, 2147483648
    %v1316 = vmul.f32 %v1315, 1.442695
    %v1317 = vpow.pop %v1316
    %v1318 = vadd.f32 %v1317, 1.0
    %v1319 = vrcp.pop %v1318
    %v1320 = vmul.f32 %v1318, %v1319
    %v1321 = vsub.f32 1.0, %v1320
    %v1322 = vmul.f32 %v1319, %v1321
    %v1323 = vadd.f32 %v1319, %v1322
    %vm1324 = vweird.f32 %v1318
    %vm1325 = vweird.f32 %v1319
    %vm1326 = vmor %vm1324, %vm1325
    %v1327 = vsel %vm1326, %v1319, %v1323
    %v1328 = vand.u32 2147483647, %v1318
    %vm1329 = vcmp.eq.f32.partialorder %v1328, 8.507059e+37
    %v1330 = vand.u32 %v1318, 2147483648
    %v1331 = vor.u32 1.1754944e-38, %v1330
    %v1332 = vsel %vm1329, %v1331, %v1327
    %v1333 = vmul.f32 1.0, %v1332
    %v1334 = vtanh.pop %v1272
    %v1335 = vxor.u32 %v1295, 2147483648
    %v1336 = vmul.f32 %v1335, 1.442695
    %v1337 = vpow.pop %v1336
    %v1338 = vadd.f32 %v1337, 1.0
    %v1339 = vrcp.pop %v1338
    %v1340 = vmul.f32 %v1338, %v1339
    %v1341 = vsub.f32 1.0, %v1340
    %v1342 = vmul.f32 %v1339, %v1341
    %v1343 = vadd.f32 %v1339, %v1342
    %vm1344 = vweird.f32 %v1338
    %vm1345 = vweird.f32 %v1339
    %vm1346 = vmor %vm1344, %vm1345
    %v1347 = vsel %vm1346, %v1339, %v1343
    %v1348 = vand.u32 2147483647, %v1338
    %vm1349 = vcmp.eq.f32.partialorder %v1348, 8.507059e+37
    %v1350 = vand.u32 %v1338, 2147483648
    %v1351 = vor.u32 1.1754944e-38, %v1350
    %v1352 = vsel %vm1349, %v1351, %v1347
    %v1353 = vmul.f32 1.0, %v1352
    %v1354 = vmul.f32 %v1333, %v1196
    %v1355 = vmul.f32 %v1314, %v1334
    %v1356 = vadd.f32 %v1354, %v1355
    %v1357 = vtanh.pop %v1356
    %v1358 = vmul.f32 %v1353, %v1357
    %s1359 = scalar_lea.vmem [#allocation3], 12
    %1360 = vst.msk [vmem:[%s1359] sm:$0x3] %vm67, %v1358
    %s1361 = scalar_lea.vmem [#allocation2], 14
    %v1362 = vld [vmem:[%s1361] sm:$0x3]
    %v1364 = vsel %vm246, %v1358, 0
    %1366 = vmatpush.msra.mxu0 0.0
    %1367 = vmatpush.msra.mxu0 0.0
    %1368 = vmatpush.msra.mxu0 0.0
    %1369 = vmatpush.msra.mxu0 0.0
    %1370 = vmatpush.msra.mxu0 0.0
    %1371 = vmatpush.msra.mxu0 0.0
    %1372 = vmatpush.msra.mxu0 0.0
    %1373 = vmatpush.msra.mxu0 0.0
    %1374 = vmatpush.msra.mxu0 0.0
    %1375 = vmatpush.msra.mxu0 0.0
    %1376 = vmatpush.msra.mxu0 0.0
    %1377 = vmatpush.msra.mxu0 0.0
    %1378 = vmatpush.msra.mxu0 %v229
    %1379 = vmatpush.msra.mxu0 %v228
    %1380 = vmatpush.msra.mxu0 %v227
    %1381 = vmatpush.msra.mxu0 %v226
    %1382 = vmatmul.f32.gmra.mxu0 %v1364
    %v1383 = vpop.f32.mrf.mxu0
    %v1384 = vadd.f32 0.0, %v1383
    %1385 = vdwg.mxu0
    %v1386 = vadd.f32 %v1362, %v1384
    %s1387 = scalar_lea.vmem [#allocation2], 30
    %v1388 = vld [vmem:[%s1387] sm:$0x3]
    %1389 = vmatpush.msra.mxu0 0.0
    %1390 = vmatpush.msra.mxu0 0.0
    %1391 = vmatpush.msra.mxu0 0.0
    %1392 = vmatpush.msra.mxu0 0.0
    %1393 = vmatpush.msra.mxu0 0.0
    %1394 = vmatpush.msra.mxu0 0.0
    %1395 = vmatpush.msra.mxu0 0.0
    %1396 = vmatpush.msra.mxu0 0.0
    %1397 = vmatpush.msra.mxu0 0.0
    %1398 = vmatpush.msra.mxu0 0.0
    %1399 = vmatpush.msra.mxu0 0.0
    %1400 = vmatpush.msra.mxu0 0.0
    %1401 = vmatpush.msra.mxu0 %v233
    %1402 = vmatpush.msra.mxu0 %v232
    %1403 = vmatpush.msra.mxu0 %v231
    %1404 = vmatpush.msra.mxu0 %v230
    %1405 = vmatmul.f32.gmra.mxu0 %v1364
    %v1406 = vpop.f32.mrf.mxu0
    %v1407 = vadd.f32 0.0, %v1406
    %1408 = vdwg.mxu0
    %v1409 = vadd.f32 %v1388, %v1407
    %s1410 = scalar_lea.vmem [#allocation2], 46
    %v1411 = vld [vmem:[%s1410] sm:$0x3]
    %1412 = vmatpush.msra.mxu0 0.0
    %1413 = vmatpush.msra.mxu0 0.0
    %1414 = vmatpush.msra.mxu0 0.0
    %1415 = vmatpush.msra.mxu0 0.0
    %1416 = vmatpush.msra.mxu0 0.0
    %1417 = vmatpush.msra.mxu0 0.0
    %1418 = vmatpush.msra.mxu0 0.0
    %1419 = vmatpush.msra.mxu0 0.0
    %1420 = vmatpush.msra.mxu0 0.0
    %1421 = vmatpush.msra.mxu0 0.0
    %1422 = vmatpush.msra.mxu0 0.0
    %1423 = vmatpush.msra.mxu0 0.0
    %1424 = vmatpush.msra.mxu0 %v237
    %1425 = vmatpush.msra.mxu0 %v236
    %1426 = vmatpush.msra.mxu0 %v235
    %1427 = vmatpush.msra.mxu0 %v234
    %1428 = vmatmul.f32.gmra.mxu0 %v1364
    %v1429 = vpop.f32.mrf.mxu0
    %v1430 = vadd.f32 0.0, %v1429
    %1431 = vdwg.mxu0
    %v1432 = vadd.f32 %v1411, %v1430
    %s1433 = scalar_lea.vmem [#allocation2], 62
    %v1434 = vld [vmem:[%s1433] sm:$0x3]
    %1435 = vmatpush.msra.mxu0 0.0
    %1436 = vmatpush.msra.mxu0 0.0
    %1437 = vmatpush.msra.mxu0 0.0
    %1438 = vmatpush.msra.mxu0 0.0
    %1439 = vmatpush.msra.mxu0 0.0
    %1440 = vmatpush.msra.mxu0 0.0
    %1441 = vmatpush.msra.mxu0 0.0
    %1442 = vmatpush.msra.mxu0 0.0
    %1443 = vmatpush.msra.mxu0 0.0
    %1444 = vmatpush.msra.mxu0 0.0
    %1445 = vmatpush.msra.mxu0 0.0
    %1446 = vmatpush.msra.mxu0 0.0
    %1447 = vmatpush.msra.mxu0 %v241
    %1448 = vmatpush.msra.mxu0 %v240
    %1449 = vmatpush.msra.mxu0 %v239
    %1450 = vmatpush.msra.mxu0 %v238
    %1451 = vmatmul.f32.gmra.mxu0 %v1364
    %v1452 = vpop.f32.mrf.mxu0
    %v1453 = vadd.f32 0.0, %v1452
    %1454 = vdwg.mxu0
    %v1455 = vadd.f32 %v1434, %v1453
    %v1456 = vxor.u32 %v1386, 2147483648
    %v1457 = vmul.f32 %v1456, 1.442695
    %v1458 = vpow.pop %v1457
    %v1459 = vadd.f32 %v1458, 1.0
    %v1460 = vrcp.pop %v1459
    %v1461 = vmul.f32 %v1459, %v1460
    %v1462 = vsub.f32 1.0, %v1461
    %v1463 = vmul.f32 %v1460, %v1462
    %v1464 = vadd.f32 %v1460, %v1463
    %vm1465 = vweird.f32 %v1459
    %vm1466 = vweird.f32 %v1460
    %vm1467 = vmor %vm1465, %vm1466
    %v1468 = vsel %vm1467, %v1460, %v1464
    %v1469 = vand.u32 2147483647, %v1459
    %vm1470 = vcmp.eq.f32.partialorder %v1469, 8.507059e+37
    %v1471 = vand.u32 %v1459, 2147483648
    %v1472 = vor.u32 1.1754944e-38, %v1471
    %v1473 = vsel %vm1470, %v1472, %v1468
    %v1474 = vmul.f32 1.0, %v1473
    %v1475 = vxor.u32 %v1409, 2147483648
    %v1476 = vmul.f32 %v1475, 1.442695
    %v1477 = vpow.pop %v1476
    %v1478 = vadd.f32 %v1477, 1.0
    %v1479 = vrcp.pop %v1478
    %v1480 = vmul.f32 %v1478, %v1479
    %v1481 = vsub.f32 1.0, %v1480
    %v1482 = vmul.f32 %v1479, %v1481
    %v1483 = vadd.f32 %v1479, %v1482
    %vm1484 = vweird.f32 %v1478
    %vm1485 = vweird.f32 %v1479
    %vm1486 = vmor %vm1484, %vm1485
    %v1487 = vsel %vm1486, %v1479, %v1483
    %v1488 = vand.u32 2147483647, %v1478
    %vm1489 = vcmp.eq.f32.partialorder %v1488, 8.507059e+37
    %v1490 = vand.u32 %v1478, 2147483648
    %v1491 = vor.u32 1.1754944e-38, %v1490
    %v1492 = vsel %vm1489, %v1491, %v1487
    %v1493 = vmul.f32 1.0, %v1492
    %v1494 = vtanh.pop %v1432
    %v1495 = vxor.u32 %v1455, 2147483648
    %v1496 = vmul.f32 %v1495, 1.442695
    %v1497 = vpow.pop %v1496
    %v1498 = vadd.f32 %v1497, 1.0
    %v1499 = vrcp.pop %v1498
    %v1500 = vmul.f32 %v1498, %v1499
    %v1501 = vsub.f32 1.0, %v1500
    %v1502 = vmul.f32 %v1499, %v1501
    %v1503 = vadd.f32 %v1499, %v1502
    %vm1504 = vweird.f32 %v1498
    %vm1505 = vweird.f32 %v1499
    %vm1506 = vmor %vm1504, %vm1505
    %v1507 = vsel %vm1506, %v1499, %v1503
    %v1508 = vand.u32 2147483647, %v1498
    %vm1509 = vcmp.eq.f32.partialorder %v1508, 8.507059e+37
    %v1510 = vand.u32 %v1498, 2147483648
    %v1511 = vor.u32 1.1754944e-38, %v1510
    %v1512 = vsel %vm1509, %v1511, %v1507
    %v1513 = vmul.f32 1.0, %v1512
    %v1514 = vmul.f32 %v1493, %v1356
    %v1515 = vmul.f32 %v1474, %v1494
    %v1516 = vadd.f32 %v1514, %v1515
    %v1517 = vtanh.pop %v1516
    %v1518 = vmul.f32 %v1513, %v1517
    %s1519 = scalar_lea.vmem [#allocation3], 14
    %1520 = vst.msk [vmem:[%s1519] sm:$0x3] %vm67, %v1518
    %1521 = vst.msk [vmem:[#allocation5] sm:$0x3] %vm67, %v1518
    %s1522 = scalar_lea.vmem [#allocation5], 2
    %1523 = vst.msk [vmem:[%s1522] sm:$0x3] %vm67, %v1516
    // Predicated region
    $region14: #{tpu_custom_call.1} parent=1 // pred_check
      _
    $region15: #{tpu_custom_call.1} parent=1 // pred_check_branch
      %1525 = sbr.rel (0) target = $region17
    $region16: #{tpu_custom_call.1} parent=1 // pred_region
      %1527 = vsyncadd [#allocation4], 0
      %s1528 = sshll.u32 [#allocation3], 4
      %s1529 = int_to_ptr.vmem [resolvable:$true] %s1528
      %s1530 = sshll.u32 %s3, 4
      %s1531 = int_to_ptr.hbm [resolvable:$true] %s1530
      %1536 = dma.vmem_to_hbm [thread:$0]  %s1529, 256, %s1531, [#allocation4], 32, 32, 2
    $region17: #{tpu_custom_call.1} parent=1 // pred_fallthru
      _
    // Predicated region
    $region18: #{tpu_custom_call.1} parent=1 // pred_check
      _
    $region19: #{tpu_custom_call.1} parent=1 // pred_check_branch
      %1538 = sbr.rel (0) target = $region21
    $region20: #{tpu_custom_call.1} parent=1 // pred_region
      %1540 = vsyncadd [#allocation6], 0
      %s1541 = sshll.u32 [#allocation5], 4
      %s1542 = int_to_ptr.vmem [resolvable:$true] %s1541
      %s1543 = sshll.u32 %s4, 4
      %s1544 = int_to_ptr.hbm [resolvable:$true] %s1543
      %1549 = dma.vmem_to_hbm [thread:$0]  %s1542, 64, %s1544, [#allocation6], 32, 32, 2
    $region21: #{tpu_custom_call.1} parent=1 // pred_fallthru
      _
    // Predicated region
    $region22: #{tpu_custom_call.1} parent=1 // pred_check
      _
    $region23: #{tpu_custom_call.1} parent=1 // pred_check_branch
      %1551 = sbr.rel (0) target = $region25
    $region24: #{tpu_custom_call.1} parent=1 // pred_region
      %1553 = dma.done [#allocation4], 256
    $region25: #{tpu_custom_call.1} parent=1 // pred_fallthru
      _
    // Predicated region
    $region26: #{tpu_custom_call.1} parent=1 // pred_check
      _
    $region27: #{tpu_custom_call.1} parent=1 // pred_check_branch
      %1555 = sbr.rel (0) target = $region29
    $region28: #{tpu_custom_call.1} parent=1 // pred_region
      %1557 = dma.done [#allocation6], 64
    $region29: #{tpu_custom_call.1} parent=1 // pred_fallthru
      _
    %1558 = vsyncpa [#allocation4], 1
    %1559 = vsyncpa [#allocation6], 1

</llo_original>
